<compile_context>
chip_gen: v5e
topology: v5e:2x2
jax: 0.10.0
libtpu: 0.0.40
codegen_flags: <defaults>
</compile_context>

<pallas_src>
import functools

import jax
import jax.numpy as jnp
from jax import lax
from jax.experimental import pallas as pl
from jax.experimental.pallas import tpu as pltpu

EPS = 1e-8  # train_domain=True in the reference module


def local_layer_kernel(x_ref, c_ref, o_ref, *, in_features):
    """One batch tile.

    x_ref : [Fin, TB]        x transposed (batch on lanes)
    c_ref : [3, Fout, Fin]   stacked (left, right, norm^2) constants, Fin on lanes
    o_ref : [TB, Fout]       natural (batch-major) output layout
    """
    fout = c_ref.shape[1]

    def term(i):
        # [1, TB] sublane row of x; [Fout, 1] constant columns (static lane slice).
        xi = x_ref[pl.ds(i, 1), :]
        col = c_ref[:, :, pl.ds(i, 1)]          # [3, Fout, 1]
        li, ri, n2i = col[0], col[1], col[2]    # each [Fout, 1]
        # relu(x-l)*relu(r-x) == max((x-l)*(r-x), 0) because l < r means the two
        # factors can never be simultaneously negative; the reference hardtanh
        # clip is redundant for the same reason.  7 VALU ops per element.
        ab = (xi - li) * (ri - xi)              # [Fout, TB]
        t = jnp.maximum(ab, 0.0)
        return t * t * n2i                      # n2 = norm**2 (precomputed)

    # Static unroll over Fin: all slices static, no dynamic lane indexing.
    # TODO(synk): for very large in_features, move the Fin reduction onto an
    # "arbitrary" grid axis with a VMEM accumulator instead of unrolling.
    acc = term(0)
    for i in range(1, in_features):
        acc = acc + term(i)

    # Epilogue: produce the natural [TB, Fout] layout without a separate XLA
    # transpose pass over HBM.  acc is [Fout, TB]; transpose it on the (idle)
    # MXU via an identity matrix:  out[b, f] = sum_g acc[g, b] * I[g, f].
    rows = lax.broadcasted_iota(jnp.int32, (fout, fout), 0)
    cols = lax.broadcasted_iota(jnp.int32, (fout, fout), 1)
    eye = jnp.where(rows == cols, 1.0, 0.0).astype(jnp.float32)
    out_nat = lax.dot_general(
        acc, eye, (((0,), (0,)), ((), ())),
        precision=lax.Precision.HIGHEST,        # exact f32 (identity weights)
        preferred_element_type=jnp.float32)     # [TB, Fout]
    o_ref[...] = out_nat.astype(o_ref.dtype)


def _round_up(n, m):
    return ((n + m - 1) // m) * m


def _round_down(n, m):
    return (n // m) * m


def local_layer(x, left_bounds, right_bounds, *, eps=EPS, block_b=512):
    """Pallas port of LocalLayer.forward.  x: [B, Fin] -> [B, Fout] (float32)."""
    B, fin = x.shape
    fin2, fout = left_bounds.shape
    assert fin == fin2, "bounds / input feature mismatch"

    f32 = jnp.float32
    lb = left_bounds.astype(f32)
    rb = right_bounds.astype(f32)

    # Grid-invariant constants, computed once in the wrapper:
    #   n2 = (4 / ((r-l)^2 + eps))^2   so the kernel does max(ab,0)^2 * n2.
    # Packed as ONE [3, Fout, Fin] array (Fin on lanes -> compact VMEM tiling).
    norm = 4.0 / ((rb - lb) ** 2 + eps)
    consts = jnp.stack([lb.T, rb.T, (norm * norm).T])        # [3, Fout, Fin]

    # Lane-dense batch tiling: keep the f32 [Fout, TB] accumulator (+ one term
    # temporary) well inside the 64 x 4 KiB vreg file to avoid spills.
    fout_sub = _round_up(fout, 8)
    bb_vreg_cap = max(128, _round_down((24 * 1024) // fout_sub, 128))
    bb = min(_round_up(block_b, 128), bb_vreg_cap, _round_up(B, 128))
    # Aim for >= 2 grid steps per v7x TensorCore (>= 4 total) when the batch
    # allows, keeping tiles >= 256 lanes so per-step overhead stays negligible.
    if B >= 4 * 256:
        bb = min(bb, max(256, _round_up(pl.cdiv(B, 4), 128)))
    elif B >= 2 * 256:
        bb = min(bb, max(256, _round_up(pl.cdiv(B, 2), 128)))
    bb = max(bb, 128)
    b_pad = _round_up(B, bb)
    grid_b = b_pad // bb

    # Only remaining wrapper-side transpose: x -> x^T (Fin-sized, i.e. the
    # cheap one).  The output comes back from the kernel already batch-major,
    # so there is no output transpose pass over HBM.
    xt = x.astype(f32).T                                     # [Fin, B]
    if b_pad != B:
        xt = jnp.pad(xt, ((0, 0), (0, b_pad - B)))           # zero-pad ragged batch

    kernel = functools.partial(local_layer_kernel, in_features=fin)
    flops = 7 * b_pad * fin * fout + 2 * b_pad * fout * fout
    bytes_accessed = 4 * (b_pad * fin + b_pad * fout + 3 * fin * fout)

    out = pl.pallas_call(
        kernel,
        out_shape=jax.ShapeDtypeStruct((b_pad, fout), f32),
        grid_spec=pltpu.PrefetchScalarGridSpec(
            num_scalar_prefetch=0,
            grid=(grid_b,),
            in_specs=[
                pl.BlockSpec((fin, bb), lambda i: (0, i)),          # x^T tile
                pl.BlockSpec((3, fout, fin), lambda i: (0, 0, 0)),  # packed consts
            ],
            out_specs=pl.BlockSpec((bb, fout), lambda i: (i, 0)),   # natural layout
        ),
        compiler_params=pltpu.CompilerParams(
            dimension_semantics=("parallel",)),
        cost_estimate=pl.CostEstimate(
            flops=flops, transcendentals=0, bytes_accessed=bytes_accessed),
    )(xt, consts)

    return out[:B]                                           # [B, Fout]


def reference(x, l, r, eps=EPS):
    # Pure-JAX port of LocalLayer.forward (original formula, with hardtanh).
    upper = jnp.max(r)
    lower = jnp.min(l)
    xc = jnp.clip(x, lower, upper)
    xe = xc[:, :, None]                                      # [B, Fin, 1]
    norm = 4.0 / ((r - l) ** 2 + eps)
    t = jnp.maximum(xe - l[None], 0.0) * jnp.maximum(r[None] - xe, 0.0) * norm[None]
    t = t * t
    return t.sum(axis=1)                                     # [B, Fout]


if __name__ == "__main__":
    in_features, out_features = 4, 32
    x_min, x_max = -1.0, 1.0

    # reset_parameters(): left/right bounds from a linspace over [x_min, x_max]
    domain = jnp.linspace(x_min, x_max, out_features + 1, dtype=jnp.float32)
    left_bounds = jnp.tile(domain[:-1][None, :], (in_features, 1))   # [Fin, Fout]
    right_bounds = jnp.tile(domain[1:][None, :], (in_features, 1))   # [Fin, Fout]

    key = jax.random.PRNGKey(0)
    ok = True
    # B=256 exercises the lane-dense tile path; B=10 the padded ragged path.
    for B in (256, 10):
        kx, key = jax.random.split(key)
        x = jax.random.normal(kx, (B, in_features), dtype=jnp.float32) * 1.5
        out = jax.block_until_ready(local_layer(x, left_bounds, right_bounds))
        ref = reference(x, left_bounds, right_bounds)
        assert out.shape == (B, out_features)
        ok = ok and bool(jnp.allclose(out, ref, atol=1e-5, rtol=1e-4))
    assert ok, "mismatch vs reference"
    print("KERNEL_OK")
</pallas_src>

<mosaic_0001>
module attributes {stable_mosaic.version = 11 : i64} {
  func.func @local_layer_kernel(%arg0: i32, %arg1: memref<4x256xf32, #tpu.memory_space<vmem>>, %arg2: memref<3x32x4xf32, #tpu.memory_space<vmem>>, %arg3: memref<256x32xf32, #tpu.memory_space<vmem>>) attributes {dimension_semantics = [#tpu.dimension_semantics<parallel>], iteration_bounds = array<i64: 1>, scalar_prefetch = 0 : i64, scratch_operands = 0 : i64, tpu.core_type = #tpu.core_type<tc>, window_params = [{transform_indices = @transform_0, window_bounds = array<i64: 4, 256>}, {pipeline_mode = #tpu.pipeline_mode<synchronous>, transform_indices = @transform_1, window_bounds = array<i64: 3, 32, 4>}, {transform_indices = @transform_2, window_bounds = array<i64: 256, 32>}]} {
    %c0 = arith.constant 0 : index
    %c0_0 = arith.constant 0 : index
    %0 = vector.load %arg1[%c0, %c0_0] : memref<4x256xf32, #tpu.memory_space<vmem>>, vector<1x256xf32>
    %c0_1 = arith.constant 0 : index
    %c0_2 = arith.constant 0 : index
    %c0_3 = arith.constant 0 : index
    %1 = vector.load %arg2[%c0_1, %c0_2, %c0_3] : memref<3x32x4xf32, #tpu.memory_space<vmem>>, vector<3x32x1xf32>
    %2 = vector.extract_strided_slice %1 {offsets = [0, 0, 0], sizes = [1, 32, 1], strides = [1, 1, 1]} : vector<3x32x1xf32> to vector<1x32x1xf32>
    %3 = vector.shape_cast %2 : vector<1x32x1xf32> to vector<32x1xf32>
    %4 = vector.extract_strided_slice %1 {offsets = [1, 0, 0], sizes = [1, 32, 1], strides = [1, 1, 1]} : vector<3x32x1xf32> to vector<1x32x1xf32>
    %5 = vector.shape_cast %4 : vector<1x32x1xf32> to vector<32x1xf32>
    %6 = vector.extract_strided_slice %1 {offsets = [2, 0, 0], sizes = [1, 32, 1], strides = [1, 1, 1]} : vector<3x32x1xf32> to vector<1x32x1xf32>
    %7 = vector.shape_cast %6 : vector<1x32x1xf32> to vector<32x1xf32>
    %8 = vector.broadcast %0 : vector<1x256xf32> to vector<32x256xf32>
    %9 = vector.broadcast %3 : vector<32x1xf32> to vector<32x256xf32>
    %10 = arith.subf %8, %9 : vector<32x256xf32>
    %11 = vector.broadcast %5 : vector<32x1xf32> to vector<32x256xf32>
    %12 = vector.broadcast %0 : vector<1x256xf32> to vector<32x256xf32>
    %13 = arith.subf %11, %12 : vector<32x256xf32>
    %14 = arith.mulf %10, %13 : vector<32x256xf32>
    %cst = arith.constant 0.000000e+00 : f32
    %15 = vector.broadcast %cst : f32 to vector<32x256xf32>
    %16 = arith.maximumf %14, %15 : vector<32x256xf32>
    %17 = arith.mulf %16, %16 : vector<32x256xf32>
    %18 = vector.broadcast %7 : vector<32x1xf32> to vector<32x256xf32>
    %19 = arith.mulf %17, %18 : vector<32x256xf32>
    %c1 = arith.constant 1 : index
    %c0_4 = arith.constant 0 : index
    %20 = vector.load %arg1[%c1, %c0_4] : memref<4x256xf32, #tpu.memory_space<vmem>>, vector<1x256xf32>
    %c0_5 = arith.constant 0 : index
    %c0_6 = arith.constant 0 : index
    %c1_7 = arith.constant 1 : index
    %21 = vector.load %arg2[%c0_5, %c0_6, %c1_7] : memref<3x32x4xf32, #tpu.memory_space<vmem>>, vector<3x32x1xf32>
    %22 = vector.extract_strided_slice %21 {offsets = [0, 0, 0], sizes = [1, 32, 1], strides = [1, 1, 1]} : vector<3x32x1xf32> to vector<1x32x1xf32>
    %23 = vector.shape_cast %22 : vector<1x32x1xf32> to vector<32x1xf32>
    %24 = vector.extract_strided_slice %21 {offsets = [1, 0, 0], sizes = [1, 32, 1], strides = [1, 1, 1]} : vector<3x32x1xf32> to vector<1x32x1xf32>
    %25 = vector.shape_cast %24 : vector<1x32x1xf32> to vector<32x1xf32>
    %26 = vector.extract_strided_slice %21 {offsets = [2, 0, 0], sizes = [1, 32, 1], strides = [1, 1, 1]} : vector<3x32x1xf32> to vector<1x32x1xf32>
    %27 = vector.shape_cast %26 : vector<1x32x1xf32> to vector<32x1xf32>
    %28 = vector.broadcast %20 : vector<1x256xf32> to vector<32x256xf32>
    %29 = vector.broadcast %23 : vector<32x1xf32> to vector<32x256xf32>
    %30 = arith.subf %28, %29 : vector<32x256xf32>
    %31 = vector.broadcast %25 : vector<32x1xf32> to vector<32x256xf32>
    %32 = vector.broadcast %20 : vector<1x256xf32> to vector<32x256xf32>
    %33 = arith.subf %31, %32 : vector<32x256xf32>
    %34 = arith.mulf %30, %33 : vector<32x256xf32>
    %cst_8 = arith.constant 0.000000e+00 : f32
    %35 = vector.broadcast %cst_8 : f32 to vector<32x256xf32>
    %36 = arith.maximumf %34, %35 : vector<32x256xf32>
    %37 = arith.mulf %36, %36 : vector<32x256xf32>
    %38 = vector.broadcast %27 : vector<32x1xf32> to vector<32x256xf32>
    %39 = arith.mulf %37, %38 : vector<32x256xf32>
    %40 = arith.addf %19, %39 : vector<32x256xf32>
    %c2 = arith.constant 2 : index
    %c0_9 = arith.constant 0 : index
    %41 = vector.load %arg1[%c2, %c0_9] : memref<4x256xf32, #tpu.memory_space<vmem>>, vector<1x256xf32>
    %c0_10 = arith.constant 0 : index
    %c0_11 = arith.constant 0 : index
    %c2_12 = arith.constant 2 : index
    %42 = vector.load %arg2[%c0_10, %c0_11, %c2_12] : memref<3x32x4xf32, #tpu.memory_space<vmem>>, vector<3x32x1xf32>
    %43 = vector.extract_strided_slice %42 {offsets = [0, 0, 0], sizes = [1, 32, 1], strides = [1, 1, 1]} : vector<3x32x1xf32> to vector<1x32x1xf32>
    %44 = vector.shape_cast %43 : vector<1x32x1xf32> to vector<32x1xf32>
    %45 = vector.extract_strided_slice %42 {offsets = [1, 0, 0], sizes = [1, 32, 1], strides = [1, 1, 1]} : vector<3x32x1xf32> to vector<1x32x1xf32>
    %46 = vector.shape_cast %45 : vector<1x32x1xf32> to vector<32x1xf32>
    %47 = vector.extract_strided_slice %42 {offsets = [2, 0, 0], sizes = [1, 32, 1], strides = [1, 1, 1]} : vector<3x32x1xf32> to vector<1x32x1xf32>
    %48 = vector.shape_cast %47 : vector<1x32x1xf32> to vector<32x1xf32>
    %49 = vector.broadcast %41 : vector<1x256xf32> to vector<32x256xf32>
    %50 = vector.broadcast %44 : vector<32x1xf32> to vector<32x256xf32>
    %51 = arith.subf %49, %50 : vector<32x256xf32>
    %52 = vector.broadcast %46 : vector<32x1xf32> to vector<32x256xf32>
    %53 = vector.broadcast %41 : vector<1x256xf32> to vector<32x256xf32>
    %54 = arith.subf %52, %53 : vector<32x256xf32>
    %55 = arith.mulf %51, %54 : vector<32x256xf32>
    %cst_13 = arith.constant 0.000000e+00 : f32
    %56 = vector.broadcast %cst_13 : f32 to vector<32x256xf32>
    %57 = arith.maximumf %55, %56 : vector<32x256xf32>
    %58 = arith.mulf %57, %57 : vector<32x256xf32>
    %59 = vector.broadcast %48 : vector<32x1xf32> to vector<32x256xf32>
    %60 = arith.mulf %58, %59 : vector<32x256xf32>
    %61 = arith.addf %40, %60 : vector<32x256xf32>
    %c3 = arith.constant 3 : index
    %c0_14 = arith.constant 0 : index
    %62 = vector.load %arg1[%c3, %c0_14] : memref<4x256xf32, #tpu.memory_space<vmem>>, vector<1x256xf32>
    %c0_15 = arith.constant 0 : index
    %c0_16 = arith.constant 0 : index
    %c3_17 = arith.constant 3 : index
    %63 = vector.load %arg2[%c0_15, %c0_16, %c3_17] : memref<3x32x4xf32, #tpu.memory_space<vmem>>, vector<3x32x1xf32>
    %64 = vector.extract_strided_slice %63 {offsets = [0, 0, 0], sizes = [1, 32, 1], strides = [1, 1, 1]} : vector<3x32x1xf32> to vector<1x32x1xf32>
    %65 = vector.shape_cast %64 : vector<1x32x1xf32> to vector<32x1xf32>
    %66 = vector.extract_strided_slice %63 {offsets = [1, 0, 0], sizes = [1, 32, 1], strides = [1, 1, 1]} : vector<3x32x1xf32> to vector<1x32x1xf32>
    %67 = vector.shape_cast %66 : vector<1x32x1xf32> to vector<32x1xf32>
    %68 = vector.extract_strided_slice %63 {offsets = [2, 0, 0], sizes = [1, 32, 1], strides = [1, 1, 1]} : vector<3x32x1xf32> to vector<1x32x1xf32>
    %69 = vector.shape_cast %68 : vector<1x32x1xf32> to vector<32x1xf32>
    %70 = vector.broadcast %62 : vector<1x256xf32> to vector<32x256xf32>
    %71 = vector.broadcast %65 : vector<32x1xf32> to vector<32x256xf32>
    %72 = arith.subf %70, %71 : vector<32x256xf32>
    %73 = vector.broadcast %67 : vector<32x1xf32> to vector<32x256xf32>
    %74 = vector.broadcast %62 : vector<1x256xf32> to vector<32x256xf32>
    %75 = arith.subf %73, %74 : vector<32x256xf32>
    %76 = arith.mulf %72, %75 : vector<32x256xf32>
    %cst_18 = arith.constant 0.000000e+00 : f32
    %77 = vector.broadcast %cst_18 : f32 to vector<32x256xf32>
    %78 = arith.maximumf %76, %77 : vector<32x256xf32>
    %79 = arith.mulf %78, %78 : vector<32x256xf32>
    %80 = vector.broadcast %69 : vector<32x1xf32> to vector<32x256xf32>
    %81 = arith.mulf %79, %80 : vector<32x256xf32>
    %82 = arith.addf %61, %81 : vector<32x256xf32>
    %83 = tpu.iota {dimensions = array<i32: 0>} : vector<32x32xi32>
    %84 = tpu.iota {dimensions = array<i32: 1>} : vector<32x32xi32>
    %85 = arith.cmpi eq, %83, %84 : vector<32x32xi32>
    %cst_19 = arith.constant 1.000000e+00 : f32
    %cst_20 = arith.constant 0.000000e+00 : f32
    %86 = vector.broadcast %cst_19 : f32 to vector<32x32xf32>
    %87 = vector.broadcast %cst_20 : f32 to vector<32x32xf32>
    %88 = arith.select %85, %86, %87 : vector<32x32xi1>, vector<32x32xf32>
    %cst_21 = arith.constant dense<0.000000e+00> : vector<256x32xf32>
    %89 = tpu.matmul %82, %88, %cst_21 {dimension_numbers = #tpu.dot_dimension_numbers<[0], [0], [1], [1], [0, 1, 1, 1], [], []>, precision = #tpu.contract_precision<fp32>} : vector<32x256xf32>, vector<32x32xf32>, vector<256x32xf32> -> vector<256x32xf32>
    %c0_22 = arith.constant 0 : index
    %c0_23 = arith.constant 0 : index
    %90 = vector.load %arg3[%c0_22, %c0_23] : memref<256x32xf32, #tpu.memory_space<vmem>>, vector<256x32xf32>
    tpu.vector_store %arg3[%c0_22, %c0_23], %89 {strides = array<i32>} : memref<256x32xf32, #tpu.memory_space<vmem>>, vector<256x32xf32>,
    return
  }
  func.func @transform_0(%arg0: i32) -> (i32, i32) {
    %c0_i32 = arith.constant 0 : i32
    %c0_i32_0 = arith.constant 0 : i32
    return %c0_i32, %arg0 : i32, i32
  }
  func.func @transform_1(%arg0: i32) -> (i32, i32, i32) {
    %c0_i32 = arith.constant 0 : i32
    %c0_i32_0 = arith.constant 0 : i32
    %c0_i32_1 = arith.constant 0 : i32
    %c0_i32_2 = arith.constant 0 : i32
    return %c0_i32, %c0_i32_0, %c0_i32_1 : i32, i32, i32
  }
  func.func @transform_2(%arg0: i32) -> (i32, i32) {
    %c0_i32 = arith.constant 0 : i32
    %c0_i32_0 = arith.constant 0 : i32
    return %arg0, %c0_i32 : i32, i32
  }
}

</mosaic_0001>

<llo_original>
// kernel: tpu_custom_call.1
$region0: #{tpu_custom_call.1}
  #allocation0 [shape = 'u32[]', space=smem, size = 0x4, offset = 0x4, fixed_abs, tag = 'smem constant byte address 0x4 - core index']
  #allocation1 [shape = 'u32[72,128]{1,0:T(1,128)}', space=vmem, size = 0x9000, scoped, tag = 'internal scratch']
  %s0 = inlined_call_operand.vmem [shape: f32[4,256], index: 0, kind: input, shape index: {}]
  %s1 = inlined_call_operand.vmem [shape: f32[3,32,4], index: 1, kind: input, shape index: {}]
  %s2 = inlined_call_operand.vmem [shape: f32[256,32], index: 2, kind: output, shape index: {}]
  %s3 = sld [smem:[#allocation0]]
  $region18: #{tpu_custom_call.1} parent=0
    _
  %s5 = ssub.s32 1, %s3
  %s6 = scalar_select 0, %s5, %s3
  // Predicated region
  $region2: #{tpu_custom_call.1} parent=0 // pred_check
    _
  $region3: #{tpu_custom_call.1} parent=0 // pred_check_branch
    %8 = sbr.rel (0) target = $region5
  $region4: #{tpu_custom_call.1} parent=0 // pred_region
    _
  $region5: #{tpu_custom_call.1} parent=0 // pred_fallthru
    _
  // Predicated region
  $region6: #{tpu_custom_call.1} parent=0 // pred_check
    _
  $region7: #{tpu_custom_call.1} parent=0 // pred_check_branch
    %10 = sbr.rel (0) target = $region9
  $region8: #{tpu_custom_call.1} parent=0 // pred_region
    _
  $region9: #{tpu_custom_call.1} parent=0 // pred_fallthru
    _
  %v11 = vld [vmem:[%s0] ss:$4 sm:$0x3]
  %v12 = vld [vmem:[%s1] sm:$0xff]
  %v13 = vld [vmem:[%s1 + $0x8] sm:$0xff]
  %v14 = vld [vmem:[%s1 + $0x10] sm:$0xff]
  %v15 = vld [vmem:[%s1 + $0x18] sm:$0xff]
  %v16 = vld [vmem:[%s1 + $0x20] sm:$0xff]
  %v17 = vld [vmem:[%s1 + $0x28] sm:$0xff]
  %v18 = vld [vmem:[%s1 + $0x30] sm:$0xff]
  %v19 = vld [vmem:[%s1 + $0x38] sm:$0xff]
  %v20 = vld [vmem:[%s1 + $0x40] sm:$0xff]
  %v21 = vld [vmem:[%s1 + $0x48] sm:$0xff]
  %v22 = vld [vmem:[%s1 + $0x50] sm:$0xff]
  %v23 = vld [vmem:[%s1 + $0x58] sm:$0xff]
  %v25 = vperm.slane %v11, 0
  %v26 = vperm.slane %v11, 1
  %30 = vset.pattern.permute.xlu0 0
  %31 = vperm.xlu0 %30, %v12
  %v32 = vpop.permute.xlu0 %31
  %35 = vset.pattern.permute.xlu0 0
  %36 = vperm.xlu0 %35, %v13
  %v37 = vpop.permute.xlu0 %36
  %40 = vset.pattern.permute.xlu0 0
  %41 = vperm.xlu0 %40, %v14
  %v42 = vpop.permute.xlu0 %41
  %45 = vset.pattern.permute.xlu0 0
  %46 = vperm.xlu0 %45, %v15
  %v47 = vpop.permute.xlu0 %46
  %v49 = vsub.f32 %v25, %v32
  %v50 = vsub.f32 %v26, %v32
  %v51 = vsub.f32 %v25, %v37
  %v52 = vsub.f32 %v26, %v37
  %v53 = vsub.f32 %v25, %v42
  %v54 = vsub.f32 %v26, %v42
  %v55 = vsub.f32 %v25, %v47
  %v56 = vsub.f32 %v26, %v47
  %58 = vset.pattern.permute.xlu0 0
  %59 = vperm.xlu0 %58, %v16
  %v60 = vpop.permute.xlu0 %59
  %63 = vset.pattern.permute.xlu0 0
  %64 = vperm.xlu0 %63, %v17
  %v65 = vpop.permute.xlu0 %64
  %68 = vset.pattern.permute.xlu0 0
  %69 = vperm.xlu0 %68, %v18
  %v70 = vpop.permute.xlu0 %69
  %73 = vset.pattern.permute.xlu0 0
  %74 = vperm.xlu0 %73, %v19
  %v75 = vpop.permute.xlu0 %74
  %v77 = vsub.f32 %v60, %v25
  %v78 = vsub.f32 %v60, %v26
  %v79 = vsub.f32 %v65, %v25
  %v80 = vsub.f32 %v65, %v26
  %v81 = vsub.f32 %v70, %v25
  %v82 = vsub.f32 %v70, %v26
  %v83 = vsub.f32 %v75, %v25
  %v84 = vsub.f32 %v75, %v26
  %v85 = vmul.f32 %v49, %v77
  %v86 = vmul.f32 %v50, %v78
  %v87 = vmul.f32 %v51, %v79
  %v88 = vmul.f32 %v52, %v80
  %v89 = vmul.f32 %v53, %v81
  %v90 = vmul.f32 %v54, %v82
  %v91 = vmul.f32 %v55, %v83
  %v92 = vmul.f32 %v56, %v84
  %v93 = vmax.f32 %v85, 0.0
  %v94 = vmax.f32 %v86, 0.0
  %v95 = vmax.f32 %v87, 0.0
  %v96 = vmax.f32 %v88, 0.0
  %v97 = vmax.f32 %v89, 0.0
  %v98 = vmax.f32 %v90, 0.0
  %v99 = vmax.f32 %v91, 0.0
  %v100 = vmax.f32 %v92, 0.0
  %v101 = vmul.f32 %v93, %v93
  %v102 = vmul.f32 %v94, %v94
  %v103 = vmul.f32 %v95, %v95
  %v104 = vmul.f32 %v96, %v96
  %v105 = vmul.f32 %v97, %v97
  %v106 = vmul.f32 %v98, %v98
  %v107 = vmul.f32 %v99, %v99
  %v108 = vmul.f32 %v100, %v100
  %110 = vset.pattern.permute.xlu0 0
  %111 = vperm.xlu0 %110, %v20
  %v112 = vpop.permute.xlu0 %111
  %115 = vset.pattern.permute.xlu0 0
  %116 = vperm.xlu0 %115, %v21
  %v117 = vpop.permute.xlu0 %116
  %120 = vset.pattern.permute.xlu0 0
  %121 = vperm.xlu0 %120, %v22
  %v122 = vpop.permute.xlu0 %121
  %125 = vset.pattern.permute.xlu0 0
  %126 = vperm.xlu0 %125, %v23
  %v127 = vpop.permute.xlu0 %126
  %v129 = vmul.f32 %v101, %v112
  %v130 = vmul.f32 %v102, %v112
  %v131 = vmul.f32 %v103, %v117
  %v132 = vmul.f32 %v104, %v117
  %v133 = vmul.f32 %v105, %v122
  %v134 = vmul.f32 %v106, %v122
  %v135 = vmul.f32 %v107, %v127
  %v136 = vmul.f32 %v108, %v127
  %s137 = scalar_lea.vmem %s0, 1
  %v138 = vld [vmem:[%s137] ss:$4 sm:$0x3]
  %v140 = vperm.slane %v138, 0
  %v141 = vperm.slane %v138, 1
  %144 = vset.pattern.permute.xlu0 1
  %145 = vperm.xlu0 %144, %v12
  %v146 = vpop.permute.xlu0 %145
  %148 = vset.pattern.permute.xlu0 1
  %149 = vperm.xlu0 %148, %v13
  %v150 = vpop.permute.xlu0 %149
  %152 = vset.pattern.permute.xlu0 1
  %153 = vperm.xlu0 %152, %v14
  %v154 = vpop.permute.xlu0 %153
  %156 = vset.pattern.permute.xlu0 1
  %157 = vperm.xlu0 %156, %v15
  %v158 = vpop.permute.xlu0 %157
  %v160 = vsub.f32 %v140, %v146
  %v161 = vsub.f32 %v141, %v146
  %v162 = vsub.f32 %v140, %v150
  %v163 = vsub.f32 %v141, %v150
  %v164 = vsub.f32 %v140, %v154
  %v165 = vsub.f32 %v141, %v154
  %v166 = vsub.f32 %v140, %v158
  %v167 = vsub.f32 %v141, %v158
  %168 = vset.pattern.permute.xlu0 1
  %169 = vperm.xlu0 %168, %v16
  %v170 = vpop.permute.xlu0 %169
  %172 = vset.pattern.permute.xlu0 1
  %173 = vperm.xlu0 %172, %v17
  %v174 = vpop.permute.xlu0 %173
  %176 = vset.pattern.permute.xlu0 1
  %177 = vperm.xlu0 %176, %v18
  %v178 = vpop.permute.xlu0 %177
  %180 = vset.pattern.permute.xlu0 1
  %181 = vperm.xlu0 %180, %v19
  %v182 = vpop.permute.xlu0 %181
  %v184 = vsub.f32 %v170, %v140
  %v185 = vsub.f32 %v170, %v141
  %v186 = vsub.f32 %v174, %v140
  %v187 = vsub.f32 %v174, %v141
  %v188 = vsub.f32 %v178, %v140
  %v189 = vsub.f32 %v178, %v141
  %v190 = vsub.f32 %v182, %v140
  %v191 = vsub.f32 %v182, %v141
  %v192 = vmul.f32 %v160, %v184
  %v193 = vmul.f32 %v161, %v185
  %v194 = vmul.f32 %v162, %v186
  %v195 = vmul.f32 %v163, %v187
  %v196 = vmul.f32 %v164, %v188
  %v197 = vmul.f32 %v165, %v189
  %v198 = vmul.f32 %v166, %v190
  %v199 = vmul.f32 %v167, %v191
  %v200 = vmax.f32 %v192, 0.0
  %v201 = vmax.f32 %v193, 0.0
  %v202 = vmax.f32 %v194, 0.0
  %v203 = vmax.f32 %v195, 0.0
  %v204 = vmax.f32 %v196, 0.0
  %v205 = vmax.f32 %v197, 0.0
  %v206 = vmax.f32 %v198, 0.0
  %v207 = vmax.f32 %v199, 0.0
  %v208 = vmul.f32 %v200, %v200
  %v209 = vmul.f32 %v201, %v201
  %v210 = vmul.f32 %v202, %v202
  %v211 = vmul.f32 %v203, %v203
  %v212 = vmul.f32 %v204, %v204
  %v213 = vmul.f32 %v205, %v205
  %v214 = vmul.f32 %v206, %v206
  %v215 = vmul.f32 %v207, %v207
  %216 = vset.pattern.permute.xlu0 1
  %217 = vperm.xlu0 %216, %v20
  %v218 = vpop.permute.xlu0 %217
  %220 = vset.pattern.permute.xlu0 1
  %221 = vperm.xlu0 %220, %v21
  %v222 = vpop.permute.xlu0 %221
  %224 = vset.pattern.permute.xlu0 1
  %225 = vperm.xlu0 %224, %v22
  %v226 = vpop.permute.xlu0 %225
  %228 = vset.pattern.permute.xlu0 1
  %229 = vperm.xlu0 %228, %v23
  %v230 = vpop.permute.xlu0 %229
  %v232 = vmul.f32 %v208, %v218
  %v233 = vmul.f32 %v209, %v218
  %v234 = vmul.f32 %v210, %v222
  %v235 = vmul.f32 %v211, %v222
  %v236 = vmul.f32 %v212, %v226
  %v237 = vmul.f32 %v213, %v226
  %v238 = vmul.f32 %v214, %v230
  %v239 = vmul.f32 %v215, %v230
  %v240 = vadd.f32 %v129, %v232
  %v241 = vadd.f32 %v130, %v233
  %v242 = vadd.f32 %v131, %v234
  %v243 = vadd.f32 %v132, %v235
  %v244 = vadd.f32 %v133, %v236
  %v245 = vadd.f32 %v134, %v237
  %v246 = vadd.f32 %v135, %v238
  %v247 = vadd.f32 %v136, %v239
  %s248 = scalar_lea.vmem %s0, 2
  %v249 = vld [vmem:[%s248] ss:$4 sm:$0x3]
  %v251 = vperm.slane %v249, 0
  %v252 = vperm.slane %v249, 1
  %255 = vset.pattern.permute.xlu0 2
  %256 = vperm.xlu0 %255, %v12
  %v257 = vpop.permute.xlu0 %256
  %259 = vset.pattern.permute.xlu0 2
  %260 = vperm.xlu0 %259, %v13
  %v261 = vpop.permute.xlu0 %260
  %263 = vset.pattern.permute.xlu0 2
  %264 = vperm.xlu0 %263, %v14
  %v265 = vpop.permute.xlu0 %264
  %267 = vset.pattern.permute.xlu0 2
  %268 = vperm.xlu0 %267, %v15
  %v269 = vpop.permute.xlu0 %268
  %v271 = vsub.f32 %v251, %v257
  %v272 = vsub.f32 %v252, %v257
  %v273 = vsub.f32 %v251, %v261
  %v274 = vsub.f32 %v252, %v261
  %v275 = vsub.f32 %v251, %v265
  %v276 = vsub.f32 %v252, %v265
  %v277 = vsub.f32 %v251, %v269
  %v278 = vsub.f32 %v252, %v269
  %279 = vset.pattern.permute.xlu0 2
  %280 = vperm.xlu0 %279, %v16
  %v281 = vpop.permute.xlu0 %280
  %283 = vset.pattern.permute.xlu0 2
  %284 = vperm.xlu0 %283, %v17
  %v285 = vpop.permute.xlu0 %284
  %287 = vset.pattern.permute.xlu0 2
  %288 = vperm.xlu0 %287, %v18
  %v289 = vpop.permute.xlu0 %288
  %291 = vset.pattern.permute.xlu0 2
  %292 = vperm.xlu0 %291, %v19
  %v293 = vpop.permute.xlu0 %292
  %v295 = vsub.f32 %v281, %v251
  %v296 = vsub.f32 %v281, %v252
  %v297 = vsub.f32 %v285, %v251
  %v298 = vsub.f32 %v285, %v252
  %v299 = vsub.f32 %v289, %v251
  %v300 = vsub.f32 %v289, %v252
  %v301 = vsub.f32 %v293, %v251
  %v302 = vsub.f32 %v293, %v252
  %v303 = vmul.f32 %v271, %v295
  %v304 = vmul.f32 %v272, %v296
  %v305 = vmul.f32 %v273, %v297
  %v306 = vmul.f32 %v274, %v298
  %v307 = vmul.f32 %v275, %v299
  %v308 = vmul.f32 %v276, %v300
  %v309 = vmul.f32 %v277, %v301
  %v310 = vmul.f32 %v278, %v302
  %v311 = vmax.f32 %v303, 0.0
  %v312 = vmax.f32 %v304, 0.0
  %v313 = vmax.f32 %v305, 0.0
  %v314 = vmax.f32 %v306, 0.0
  %v315 = vmax.f32 %v307, 0.0
  %v316 = vmax.f32 %v308, 0.0
  %v317 = vmax.f32 %v309, 0.0
  %v318 = vmax.f32 %v310, 0.0
  %v319 = vmul.f32 %v311, %v311
  %v320 = vmul.f32 %v312, %v312
  %v321 = vmul.f32 %v313, %v313
  %v322 = vmul.f32 %v314, %v314
  %v323 = vmul.f32 %v315, %v315
  %v324 = vmul.f32 %v316, %v316
  %v325 = vmul.f32 %v317, %v317
  %v326 = vmul.f32 %v318, %v318
  %327 = vset.pattern.permute.xlu0 2
  %328 = vperm.xlu0 %327, %v20
  %v329 = vpop.permute.xlu0 %328
  %331 = vset.pattern.permute.xlu0 2
  %332 = vperm.xlu0 %331, %v21
  %v333 = vpop.permute.xlu0 %332
  %335 = vset.pattern.permute.xlu0 2
  %336 = vperm.xlu0 %335, %v22
  %v337 = vpop.permute.xlu0 %336
  %339 = vset.pattern.permute.xlu0 2
  %340 = vperm.xlu0 %339, %v23
  %v341 = vpop.permute.xlu0 %340
  %v343 = vmul.f32 %v319, %v329
  %v344 = vmul.f32 %v320, %v329
  %v345 = vmul.f32 %v321, %v333
  %v346 = vmul.f32 %v322, %v333
  %v347 = vmul.f32 %v323, %v337
  %v348 = vmul.f32 %v324, %v337
  %v349 = vmul.f32 %v325, %v341
  %v350 = vmul.f32 %v326, %v341
  %v351 = vadd.f32 %v240, %v343
  %v352 = vadd.f32 %v241, %v344
  %v353 = vadd.f32 %v242, %v345
  %v354 = vadd.f32 %v243, %v346
  %v355 = vadd.f32 %v244, %v347
  %v356 = vadd.f32 %v245, %v348
  %v357 = vadd.f32 %v246, %v349
  %v358 = vadd.f32 %v247, %v350
  %s359 = scalar_lea.vmem %s0, 3
  %v360 = vld [vmem:[%s359] ss:$4 sm:$0x3]
  %v362 = vperm.slane %v360, 0
  %v363 = vperm.slane %v360, 1
  %366 = vset.pattern.permute.xlu0 3
  %367 = vperm.xlu0 %366, %v12
  %v368 = vpop.permute.xlu0 %367
  %370 = vset.pattern.permute.xlu0 3
  %371 = vperm.xlu0 %370, %v13
  %v372 = vpop.permute.xlu0 %371
  %374 = vset.pattern.permute.xlu0 3
  %375 = vperm.xlu0 %374, %v14
  %v376 = vpop.permute.xlu0 %375
  %378 = vset.pattern.permute.xlu0 3
  %379 = vperm.xlu0 %378, %v15
  %v380 = vpop.permute.xlu0 %379
  %v382 = vsub.f32 %v362, %v368
  %v383 = vsub.f32 %v363, %v368
  %v384 = vsub.f32 %v362, %v372
  %v385 = vsub.f32 %v363, %v372
  %v386 = vsub.f32 %v362, %v376
  %v387 = vsub.f32 %v363, %v376
  %v388 = vsub.f32 %v362, %v380
  %v389 = vsub.f32 %v363, %v380
  %390 = vset.pattern.permute.xlu0 3
  %391 = vperm.xlu0 %390, %v16
  %v392 = vpop.permute.xlu0 %391
  %394 = vset.pattern.permute.xlu0 3
  %395 = vperm.xlu0 %394, %v17
  %v396 = vpop.permute.xlu0 %395
  %398 = vset.pattern.permute.xlu0 3
  %399 = vperm.xlu0 %398, %v18
  %v400 = vpop.permute.xlu0 %399
  %402 = vset.pattern.permute.xlu0 3
  %403 = vperm.xlu0 %402, %v19
  %v404 = vpop.permute.xlu0 %403
  %v406 = vsub.f32 %v392, %v362
  %v407 = vsub.f32 %v392, %v363
  %v408 = vsub.f32 %v396, %v362
  %v409 = vsub.f32 %v396, %v363
  %v410 = vsub.f32 %v400, %v362
  %v411 = vsub.f32 %v400, %v363
  %v412 = vsub.f32 %v404, %v362
  %v413 = vsub.f32 %v404, %v363
  %v414 = vmul.f32 %v382, %v406
  %v415 = vmul.f32 %v383, %v407
  %v416 = vmul.f32 %v384, %v408
  %v417 = vmul.f32 %v385, %v409
  %v418 = vmul.f32 %v386, %v410
  %v419 = vmul.f32 %v387, %v411
  %v420 = vmul.f32 %v388, %v412
  %v421 = vmul.f32 %v389, %v413
  %v422 = vmax.f32 %v414, 0.0
  %v423 = vmax.f32 %v415, 0.0
  %v424 = vmax.f32 %v416, 0.0
  %v425 = vmax.f32 %v417, 0.0
  %v426 = vmax.f32 %v418, 0.0
  %v427 = vmax.f32 %v419, 0.0
  %v428 = vmax.f32 %v420, 0.0
  %v429 = vmax.f32 %v421, 0.0
  %v430 = vmul.f32 %v422, %v422
  %v431 = vmul.f32 %v423, %v423
  %v432 = vmul.f32 %v424, %v424
  %v433 = vmul.f32 %v425, %v425
  %v434 = vmul.f32 %v426, %v426
  %v435 = vmul.f32 %v427, %v427
  %v436 = vmul.f32 %v428, %v428
  %v437 = vmul.f32 %v429, %v429
  %438 = vset.pattern.permute.xlu0 3
  %439 = vperm.xlu0 %438, %v20
  %v440 = vpop.permute.xlu0 %439
  %442 = vset.pattern.permute.xlu0 3
  %443 = vperm.xlu0 %442, %v21
  %v444 = vpop.permute.xlu0 %443
  %446 = vset.pattern.permute.xlu0 3
  %447 = vperm.xlu0 %446, %v22
  %v448 = vpop.permute.xlu0 %447
  %450 = vset.pattern.permute.xlu0 3
  %451 = vperm.xlu0 %450, %v23
  %v452 = vpop.permute.xlu0 %451
  %v454 = vmul.f32 %v430, %v440
  %v455 = vmul.f32 %v431, %v440
  %v456 = vmul.f32 %v432, %v444
  %v457 = vmul.f32 %v433, %v444
  %v458 = vmul.f32 %v434, %v448
  %v459 = vmul.f32 %v435, %v448
  %v460 = vmul.f32 %v436, %v452
  %v461 = vmul.f32 %v437, %v452
  %v462 = vadd.f32 %v351, %v454
  %v463 = vadd.f32 %v352, %v455
  %v464 = vadd.f32 %v353, %v456
  %v465 = vadd.f32 %v354, %v457
  %v466 = vadd.f32 %v355, %v458
  %v467 = vadd.f32 %v356, %v459
  %v468 = vadd.f32 %v357, %v460
  %v469 = vadd.f32 %v358, %v461
  %v470 = vlaneseq
  %v471 = vshrl.u32 %v470, 7
  %v472 = vadd.s32 %v471, 8
  %v473 = vadd.s32 %v471, 16
  %v474 = vadd.s32 %v471, 24
  %v475 = vlaneseq
  %v476 = vand.u32 %v475, 127
  %vm477 = vcmp.eq.s32.totalorder %v471, %v476
  %vm478 = vcmp.eq.s32.totalorder %v472, %v476
  %vm479 = vcmp.eq.s32.totalorder %v473, %v476
  %vm480 = vcmp.eq.s32.totalorder %v474, %v476
  %v481 = vsel %vm477, 1.0, 0.0
  %v482 = vsel %vm478, 1.0, 0.0
  %v483 = vsel %vm479, 1.0, 0.0
  %v484 = vsel %vm480, 1.0, 0.0
  %485 = vxpose.xlu0.b32.start [1/16] %v462, 128
  %486 = vxpose.xlu0.b32.cont [2/16] %v464, 128
  %487 = vxpose.xlu0.b32.cont [3/16] %v466, 128
  %488 = vxpose.xlu0.b32.cont [4/16] %v468, 128
  %489 = vxpose.xlu0.b32.cont [5/16] 0.0, 128
  %490 = vxpose.xlu0.b32.cont [6/16] 0.0, 128
  %491 = vxpose.xlu0.b32.cont [7/16] 0.0, 128
  %492 = vxpose.xlu0.b32.cont [8/16] 0.0, 128
  %493 = vxpose.xlu0.b32.cont [9/16] 0.0, 128
  %494 = vxpose.xlu0.b32.cont [10/16] 0.0, 128
  %495 = vxpose.xlu0.b32.cont [11/16] 0.0, 128
  %496 = vxpose.xlu0.b32.cont [12/16] 0.0, 128
  %497 = vxpose.xlu0.b32.cont [13/16] 0.0, 128
  %498 = vxpose.xlu0.b32.cont [14/16] 0.0, 128
  %499 = vxpose.xlu0.b32.cont [15/16] 0.0, 128
  %500 = vxpose.xlu0.b32.end [16/16] 0.0, 128
  %v501 = vpop.trf.xlu0
  %v502 = vpop.trf.xlu0
  %v503 = vpop.trf.xlu0
  %v504 = vpop.trf.xlu0
  %v505 = vpop.trf.xlu0
  %v506 = vpop.trf.xlu0
  %v507 = vpop.trf.xlu0
  %v508 = vpop.trf.xlu0
  %v509 = vpop.trf.xlu0
  %v510 = vpop.trf.xlu0
  %v511 = vpop.trf.xlu0
  %v512 = vpop.trf.xlu0
  %v513 = vpop.trf.xlu0
  %v514 = vpop.trf.xlu0
  %v515 = vpop.trf.xlu0
  %v516 = vpop.trf.xlu0
  %517 = vxpose.xlu0.b32.start [1/16] %v463, 128
  %518 = vxpose.xlu0.b32.cont [2/16] %v465, 128
  %519 = vxpose.xlu0.b32.cont [3/16] %v467, 128
  %520 = vxpose.xlu0.b32.cont [4/16] %v469, 128
  %521 = vxpose.xlu0.b32.cont [5/16] 0.0, 128
  %522 = vxpose.xlu0.b32.cont [6/16] 0.0, 128
  %523 = vxpose.xlu0.b32.cont [7/16] 0.0, 128
  %524 = vxpose.xlu0.b32.cont [8/16] 0.0, 128
  %525 = vxpose.xlu0.b32.cont [9/16] 0.0, 128
  %526 = vxpose.xlu0.b32.cont [10/16] 0.0, 128
  %527 = vxpose.xlu0.b32.cont [11/16] 0.0, 128
  %528 = vxpose.xlu0.b32.cont [12/16] 0.0, 128
  %529 = vxpose.xlu0.b32.cont [13/16] 0.0, 128
  %530 = vxpose.xlu0.b32.cont [14/16] 0.0, 128
  %531 = vxpose.xlu0.b32.cont [15/16] 0.0, 128
  %532 = vxpose.xlu0.b32.end [16/16] 0.0, 128
  %v533 = vpop.trf.xlu0
  %v534 = vpop.trf.xlu0
  %v535 = vpop.trf.xlu0
  %v536 = vpop.trf.xlu0
  %v537 = vpop.trf.xlu0
  %v538 = vpop.trf.xlu0
  %v539 = vpop.trf.xlu0
  %v540 = vpop.trf.xlu0
  %v541 = vpop.trf.xlu0
  %v542 = vpop.trf.xlu0
  %v543 = vpop.trf.xlu0
  %v544 = vpop.trf.xlu0
  %v545 = vpop.trf.xlu0
  %v546 = vpop.trf.xlu0
  %v547 = vpop.trf.xlu0
  %v548 = vpop.trf.xlu0
  %vm549 = vcmask 261120
  %v551 = vsel %vm549, %v501, 0
  %v554 = vsel %vm549, %v502, 0
  %v557 = vsel %vm549, %v503, 0
  %v560 = vsel %vm549, %v504, 0
  %v563 = vsel %vm549, %v505, 0
  %v566 = vsel %vm549, %v506, 0
  %v569 = vsel %vm549, %v507, 0
  %v572 = vsel %vm549, %v508, 0
  %v575 = vsel %vm549, %v509, 0
  %v578 = vsel %vm549, %v510, 0
  %v581 = vsel %vm549, %v511, 0
  %v584 = vsel %vm549, %v512, 0
  %v587 = vsel %vm549, %v513, 0
  %v590 = vsel %vm549, %v514, 0
  %v593 = vsel %vm549, %v515, 0
  %v596 = vsel %vm549, %v516, 0
  %v599 = vsel %vm549, %v533, 0
  %v602 = vsel %vm549, %v534, 0
  %v605 = vsel %vm549, %v535, 0
  %v608 = vsel %vm549, %v536, 0
  %v611 = vsel %vm549, %v537, 0
  %v614 = vsel %vm549, %v538, 0
  %v617 = vsel %vm549, %v539, 0
  %v620 = vsel %vm549, %v540, 0
  %v623 = vsel %vm549, %v541, 0
  %v626 = vsel %vm549, %v542, 0
  %v629 = vsel %vm549, %v543, 0
  %v632 = vsel %vm549, %v544, 0
  %v635 = vsel %vm549, %v545, 0
  %v638 = vsel %vm549, %v546, 0
  %v641 = vsel %vm549, %v547, 0
  %v644 = vsel %vm549, %v548, 0
  %646 = vmatpush.msra.mxu0 0.0
  %647 = vmatpush.msra.mxu0 0.0
  %648 = vmatpush.msra.mxu0 0.0
  %649 = vmatpush.msra.mxu0 0.0
  %650 = vmatpush.msra.mxu0 0.0
  %651 = vmatpush.msra.mxu0 0.0
  %652 = vmatpush.msra.mxu0 0.0
  %653 = vmatpush.msra.mxu0 0.0
  %654 = vmatpush.msra.mxu0 0.0
  %655 = vmatpush.msra.mxu0 0.0
  %656 = vmatpush.msra.mxu0 0.0
  %657 = vmatpush.msra.mxu0 0.0
  %658 = vmatpush.msra.mxu0 %v484
  %659 = vmatpush.msra.mxu0 %v483
  %660 = vmatpush.msra.mxu0 %v482
  %661 = vmatpush.msra.mxu0 %v481
  %v662 = vand.u32 %v551, 4294901760
  %v663 = vsub.f32 %v551, %v662
  %v664 = vand.u32 %v663, 4294901760
  %v665 = vsub.f32 %v663, %v664
  %v666 = vand.u32 %v665, 4294901760
  %667 = vmatmul.f32.gmra.mxu0 %v666
  %v668 = vpop.f32.mrf.mxu0
  %v669 = vadd.f32 0.0, %v668
  %v670 = vand.u32 %v554, 4294901760
  %v671 = vsub.f32 %v554, %v670
  %v672 = vand.u32 %v671, 4294901760
  %v673 = vsub.f32 %v671, %v672
  %v674 = vand.u32 %v673, 4294901760
  %675 = vmatmul.f32.gmra.mxu0 %v674
  %v676 = vpop.f32.mrf.mxu0
  %v677 = vadd.f32 0.0, %v676
  %v678 = vand.u32 %v557, 4294901760
  %v679 = vsub.f32 %v557, %v678
  %v680 = vand.u32 %v679, 4294901760
  %v681 = vsub.f32 %v679, %v680
  %v682 = vand.u32 %v681, 4294901760
  %683 = vmatmul.f32.gmra.mxu0 %v682
  %v684 = vpop.f32.mrf.mxu0
  %v685 = vadd.f32 0.0, %v684
  %v686 = vand.u32 %v560, 4294901760
  %v687 = vsub.f32 %v560, %v686
  %v688 = vand.u32 %v687, 4294901760
  %v689 = vsub.f32 %v687, %v688
  %v690 = vand.u32 %v689, 4294901760
  %691 = vmatmul.f32.gmra.mxu0 %v690
  %v692 = vpop.f32.mrf.mxu0
  %v693 = vadd.f32 0.0, %v692
  %v694 = vand.u32 %v563, 4294901760
  %v695 = vsub.f32 %v563, %v694
  %v696 = vand.u32 %v695, 4294901760
  %v697 = vsub.f32 %v695, %v696
  %v698 = vand.u32 %v697, 4294901760
  %699 = vmatmul.f32.gmra.mxu0 %v698
  %v700 = vpop.f32.mrf.mxu0
  %v701 = vadd.f32 0.0, %v700
  %v702 = vand.u32 %v566, 4294901760
  %v703 = vsub.f32 %v566, %v702
  %v704 = vand.u32 %v703, 4294901760
  %v705 = vsub.f32 %v703, %v704
  %v706 = vand.u32 %v705, 4294901760
  %707 = vmatmul.f32.gmra.mxu0 %v706
  %v708 = vpop.f32.mrf.mxu0
  %v709 = vadd.f32 0.0, %v708
  %v710 = vand.u32 %v569, 4294901760
  %v711 = vsub.f32 %v569, %v710
  %v712 = vand.u32 %v711, 4294901760
  %v713 = vsub.f32 %v711, %v712
  %v714 = vand.u32 %v713, 4294901760
  %715 = vmatmul.f32.gmra.mxu0 %v714
  %v716 = vpop.f32.mrf.mxu0
  %v717 = vadd.f32 0.0, %v716
  %v718 = vand.u32 %v572, 4294901760
  %v719 = vsub.f32 %v572, %v718
  %v720 = vand.u32 %v719, 4294901760
  %v721 = vsub.f32 %v719, %v720
  %v722 = vand.u32 %v721, 4294901760
  %723 = vmatmul.f32.gmra.mxu0 %v722
  %v724 = vpop.f32.mrf.mxu0
  %v725 = vadd.f32 0.0, %v724
  %v726 = vand.u32 %v575, 4294901760
  %v727 = vsub.f32 %v575, %v726
  %v728 = vand.u32 %v727, 4294901760
  %v729 = vsub.f32 %v727, %v728
  %v730 = vand.u32 %v729, 4294901760
  %731 = vmatmul.f32.gmra.mxu0 %v730
  %v732 = vpop.f32.mrf.mxu0
  %v733 = vadd.f32 0.0, %v732
  %v734 = vand.u32 %v578, 4294901760
  %v735 = vsub.f32 %v578, %v734
  %v736 = vand.u32 %v735, 4294901760
  %v737 = vsub.f32 %v735, %v736
  %v738 = vand.u32 %v737, 4294901760
  %739 = vmatmul.f32.gmra.mxu0 %v738
  %v740 = vpop.f32.mrf.mxu0
  %v741 = vadd.f32 0.0, %v740
  %v742 = vand.u32 %v581, 4294901760
  %v743 = vsub.f32 %v581, %v742
  %v744 = vand.u32 %v743, 4294901760
  %v745 = vsub.f32 %v743, %v744
  %v746 = vand.u32 %v745, 4294901760
  %747 = vmatmul.f32.gmra.mxu0 %v746
  %v748 = vpop.f32.mrf.mxu0
  %v749 = vadd.f32 0.0, %v748
  %v750 = vand.u32 %v584, 4294901760
  %v751 = vsub.f32 %v584, %v750
  %v752 = vand.u32 %v751, 4294901760
  %v753 = vsub.f32 %v751, %v752
  %v754 = vand.u32 %v753, 4294901760
  %755 = vmatmul.f32.gmra.mxu0 %v754
  %v756 = vpop.f32.mrf.mxu0
  %v757 = vadd.f32 0.0, %v756
  %v758 = vand.u32 %v587, 4294901760
  %v759 = vsub.f32 %v587, %v758
  %v760 = vand.u32 %v759, 4294901760
  %v761 = vsub.f32 %v759, %v760
  %v762 = vand.u32 %v761, 4294901760
  %763 = vmatmul.f32.gmra.mxu0 %v762
  %v764 = vpop.f32.mrf.mxu0
  %v765 = vadd.f32 0.0, %v764
  %v766 = vand.u32 %v590, 4294901760
  %v767 = vsub.f32 %v590, %v766
  %v768 = vand.u32 %v767, 4294901760
  %v769 = vsub.f32 %v767, %v768
  %v770 = vand.u32 %v769, 4294901760
  %771 = vmatmul.f32.gmra.mxu0 %v770
  %v772 = vpop.f32.mrf.mxu0
  %v773 = vadd.f32 0.0, %v772
  %v774 = vand.u32 %v593, 4294901760
  %v775 = vsub.f32 %v593, %v774
  %v776 = vand.u32 %v775, 4294901760
  %v777 = vsub.f32 %v775, %v776
  %v778 = vand.u32 %v777, 4294901760
  %779 = vmatmul.f32.gmra.mxu0 %v778
  %v780 = vpop.f32.mrf.mxu0
  %v781 = vadd.f32 0.0, %v780
  %v782 = vand.u32 %v596, 4294901760
  %v783 = vsub.f32 %v596, %v782
  %v784 = vand.u32 %v783, 4294901760
  %v785 = vsub.f32 %v783, %v784
  %v786 = vand.u32 %v785, 4294901760
  %787 = vmatmul.f32.gmra.mxu0 %v786
  %v788 = vpop.f32.mrf.mxu0
  %v789 = vadd.f32 0.0, %v788
  %v790 = vand.u32 %v599, 4294901760
  %v791 = vsub.f32 %v599, %v790
  %v792 = vand.u32 %v791, 4294901760
  %v793 = vsub.f32 %v791, %v792
  %v794 = vand.u32 %v793, 4294901760
  %795 = vmatmul.f32.gmra.mxu0 %v794
  %v796 = vpop.f32.mrf.mxu0
  %v797 = vadd.f32 0.0, %v796
  %v798 = vand.u32 %v602, 4294901760
  %v799 = vsub.f32 %v602, %v798
  %v800 = vand.u32 %v799, 4294901760
  %v801 = vsub.f32 %v799, %v800
  %v802 = vand.u32 %v801, 4294901760
  %803 = vmatmul.f32.gmra.mxu0 %v802
  %v804 = vpop.f32.mrf.mxu0
  %v805 = vadd.f32 0.0, %v804
  %v806 = vand.u32 %v605, 4294901760
  %v807 = vsub.f32 %v605, %v806
  %v808 = vand.u32 %v807, 4294901760
  %v809 = vsub.f32 %v807, %v808
  %v810 = vand.u32 %v809, 4294901760
  %811 = vmatmul.f32.gmra.mxu0 %v810
  %v812 = vpop.f32.mrf.mxu0
  %v813 = vadd.f32 0.0, %v812
  %v814 = vand.u32 %v608, 4294901760
  %v815 = vsub.f32 %v608, %v814
  %v816 = vand.u32 %v815, 4294901760
  %v817 = vsub.f32 %v815, %v816
  %v818 = vand.u32 %v817, 4294901760
  %819 = vmatmul.f32.gmra.mxu0 %v818
  %v820 = vpop.f32.mrf.mxu0
  %v821 = vadd.f32 0.0, %v820
  %v822 = vand.u32 %v611, 4294901760
  %v823 = vsub.f32 %v611, %v822
  %v824 = vand.u32 %v823, 4294901760
  %v825 = vsub.f32 %v823, %v824
  %v826 = vand.u32 %v825, 4294901760
  %827 = vmatmul.f32.gmra.mxu0 %v826
  %v828 = vpop.f32.mrf.mxu0
  %v829 = vadd.f32 0.0, %v828
  %v830 = vand.u32 %v614, 4294901760
  %v831 = vsub.f32 %v614, %v830
  %v832 = vand.u32 %v831, 4294901760
  %v833 = vsub.f32 %v831, %v832
  %v834 = vand.u32 %v833, 4294901760
  %835 = vmatmul.f32.gmra.mxu0 %v834
  %v836 = vpop.f32.mrf.mxu0
  %v837 = vadd.f32 0.0, %v836
  %v838 = vand.u32 %v617, 4294901760
  %v839 = vsub.f32 %v617, %v838
  %v840 = vand.u32 %v839, 4294901760
  %v841 = vsub.f32 %v839, %v840
  %v842 = vand.u32 %v841, 4294901760
  %843 = vmatmul.f32.gmra.mxu0 %v842
  %v844 = vpop.f32.mrf.mxu0
  %v845 = vadd.f32 0.0, %v844
  %v846 = vand.u32 %v620, 4294901760
  %v847 = vsub.f32 %v620, %v846
  %v848 = vand.u32 %v847, 4294901760
  %v849 = vsub.f32 %v847, %v848
  %v850 = vand.u32 %v849, 4294901760
  %851 = vmatmul.f32.gmra.mxu0 %v850
  %v852 = vpop.f32.mrf.mxu0
  %v853 = vadd.f32 0.0, %v852
  %v854 = vand.u32 %v623, 4294901760
  %v855 = vsub.f32 %v623, %v854
  %v856 = vand.u32 %v855, 4294901760
  %v857 = vsub.f32 %v855, %v856
  %v858 = vand.u32 %v857, 4294901760
  %859 = vmatmul.f32.gmra.mxu0 %v858
  %v860 = vpop.f32.mrf.mxu0
  %v861 = vadd.f32 0.0, %v860
  %v862 = vand.u32 %v626, 4294901760
  %v863 = vsub.f32 %v626, %v862
  %v864 = vand.u32 %v863, 4294901760
  %v865 = vsub.f32 %v863, %v864
  %v866 = vand.u32 %v865, 4294901760
  %867 = vmatmul.f32.gmra.mxu0 %v866
  %v868 = vpop.f32.mrf.mxu0
  %v869 = vadd.f32 0.0, %v868
  %v870 = vand.u32 %v629, 4294901760
  %v871 = vsub.f32 %v629, %v870
  %v872 = vand.u32 %v871, 4294901760
  %v873 = vsub.f32 %v871, %v872
  %v874 = vand.u32 %v873, 4294901760
  %875 = vmatmul.f32.gmra.mxu0 %v874
  %v876 = vpop.f32.mrf.mxu0
  %v877 = vadd.f32 0.0, %v876
  %v878 = vand.u32 %v632, 4294901760
  %v879 = vsub.f32 %v632, %v878
  %v880 = vand.u32 %v879, 4294901760
  %v881 = vsub.f32 %v879, %v880
  %v882 = vand.u32 %v881, 4294901760
  %883 = vmatmul.f32.gmra.mxu0 %v882
  %v884 = vpop.f32.mrf.mxu0
  %v885 = vadd.f32 0.0, %v884
  %v886 = vand.u32 %v635, 4294901760
  %v887 = vsub.f32 %v635, %v886
  %v888 = vand.u32 %v887, 4294901760
  %v889 = vsub.f32 %v887, %v888
  %v890 = vand.u32 %v889, 4294901760
  %891 = vmatmul.f32.gmra.mxu0 %v890
  %v892 = vpop.f32.mrf.mxu0
  %v893 = vadd.f32 0.0, %v892
  %v894 = vand.u32 %v638, 4294901760
  %v895 = vsub.f32 %v638, %v894
  %v896 = vand.u32 %v895, 4294901760
  %v897 = vsub.f32 %v895, %v896
  %v898 = vand.u32 %v897, 4294901760
  %899 = vmatmul.f32.gmra.mxu0 %v898
  %v900 = vpop.f32.mrf.mxu0
  %v901 = vadd.f32 0.0, %v900
  %v902 = vand.u32 %v641, 4294901760
  %v903 = vsub.f32 %v641, %v902
  %v904 = vand.u32 %v903, 4294901760
  %v905 = vsub.f32 %v903, %v904
  %v906 = vand.u32 %v905, 4294901760
  %907 = vmatmul.f32.gmra.mxu0 %v906
  %v908 = vpop.f32.mrf.mxu0
  %v909 = vadd.f32 0.0, %v908
  %v910 = vand.u32 %v644, 4294901760
  %v911 = vsub.f32 %v644, %v910
  %v912 = vand.u32 %v911, 4294901760
  %v913 = vsub.f32 %v911, %v912
  %v914 = vand.u32 %v913, 4294901760
  %915 = vmatmul.f32.gmra.mxu0 %v914
  %v916 = vpop.f32.mrf.mxu0
  %v917 = vadd.f32 0.0, %v916
  %918 = vdwg.mxu0
  %919 = vmatpush.msra.mxu0 0.0
  %920 = vmatpush.msra.mxu0 0.0
  %921 = vmatpush.msra.mxu0 0.0
  %922 = vmatpush.msra.mxu0 0.0
  %923 = vmatpush.msra.mxu0 0.0
  %924 = vmatpush.msra.mxu0 0.0
  %925 = vmatpush.msra.mxu0 0.0
  %926 = vmatpush.msra.mxu0 0.0
  %927 = vmatpush.msra.mxu0 0.0
  %928 = vmatpush.msra.mxu0 0.0
  %929 = vmatpush.msra.mxu0 0.0
  %930 = vmatpush.msra.mxu0 0.0
  %v931 = vsub.f32 %v484, %v484
  %v932 = vand.u32 %v931, 4294901760
  %v933 = vsub.f32 %v931, %v932
  %v934 = vand.u32 %v933, 4294901760
  %935 = vmatpush.msra.mxu0 %v934
  %v936 = vsub.f32 %v483, %v483
  %v937 = vand.u32 %v936, 4294901760
  %v938 = vsub.f32 %v936, %v937
  %v939 = vand.u32 %v938, 4294901760
  %940 = vmatpush.msra.mxu0 %v939
  %v941 = vsub.f32 %v482, %v482
  %v942 = vand.u32 %v941, 4294901760
  %v943 = vsub.f32 %v941, %v942
  %v944 = vand.u32 %v943, 4294901760
  %945 = vmatpush.msra.mxu0 %v944
  %v946 = vsub.f32 %v481, %v481
  %v947 = vand.u32 %v946, 4294901760
  %v948 = vsub.f32 %v946, %v947
  %v949 = vand.u32 %v948, 4294901760
  %950 = vmatpush.msra.mxu0 %v949
  %v951 = vand.u32 %v551, 4294901760
  %952 = vmatmul.f32.gmra.mxu0 %v951
  %v953 = vpop.f32.mrf.mxu0
  %v954 = vadd.f32 %v669, %v953
  %v955 = vand.u32 %v554, 4294901760
  %956 = vmatmul.f32.gmra.mxu0 %v955
  %v957 = vpop.f32.mrf.mxu0
  %v958 = vadd.f32 %v677, %v957
  %v959 = vand.u32 %v557, 4294901760
  %960 = vmatmul.f32.gmra.mxu0 %v959
  %v961 = vpop.f32.mrf.mxu0
  %v962 = vadd.f32 %v685, %v961
  %v963 = vand.u32 %v560, 4294901760
  %964 = vmatmul.f32.gmra.mxu0 %v963
  %v965 = vpop.f32.mrf.mxu0
  %v966 = vadd.f32 %v693, %v965
  %v967 = vand.u32 %v563, 4294901760
  %968 = vmatmul.f32.gmra.mxu0 %v967
  %v969 = vpop.f32.mrf.mxu0
  %v970 = vadd.f32 %v701, %v969
  %v971 = vand.u32 %v566, 4294901760
  %972 = vmatmul.f32.gmra.mxu0 %v971
  %v973 = vpop.f32.mrf.mxu0
  %v974 = vadd.f32 %v709, %v973
  %v975 = vand.u32 %v569, 4294901760
  %976 = vmatmul.f32.gmra.mxu0 %v975
  %v977 = vpop.f32.mrf.mxu0
  %v978 = vadd.f32 %v717, %v977
  %v979 = vand.u32 %v572, 4294901760
  %980 = vmatmul.f32.gmra.mxu0 %v979
  %v981 = vpop.f32.mrf.mxu0
  %v982 = vadd.f32 %v725, %v981
  %v983 = vand.u32 %v575, 4294901760
  %984 = vmatmul.f32.gmra.mxu0 %v983
  %v985 = vpop.f32.mrf.mxu0
  %v986 = vadd.f32 %v733, %v985
  %v987 = vand.u32 %v578, 4294901760
  %988 = vmatmul.f32.gmra.mxu0 %v987
  %v989 = vpop.f32.mrf.mxu0
  %v990 = vadd.f32 %v741, %v989
  %v991 = vand.u32 %v581, 4294901760
  %992 = vmatmul.f32.gmra.mxu0 %v991
  %v993 = vpop.f32.mrf.mxu0
  %v994 = vadd.f32 %v749, %v993
  %v995 = vand.u32 %v584, 4294901760
  %996 = vmatmul.f32.gmra.mxu0 %v995
  %v997 = vpop.f32.mrf.mxu0
  %v998 = vadd.f32 %v757, %v997
  %v999 = vand.u32 %v587, 4294901760
  %1000 = vmatmul.f32.gmra.mxu0 %v999
  %v1001 = vpop.f32.mrf.mxu0
  %v1002 = vadd.f32 %v765, %v1001
  %v1003 = vand.u32 %v590, 4294901760
  %1004 = vmatmul.f32.gmra.mxu0 %v1003
  %v1005 = vpop.f32.mrf.mxu0
  %v1006 = vadd.f32 %v773, %v1005
  %v1007 = vand.u32 %v593, 4294901760
  %1008 = vmatmul.f32.gmra.mxu0 %v1007
  %v1009 = vpop.f32.mrf.mxu0
  %v1010 = vadd.f32 %v781, %v1009
  %v1011 = vand.u32 %v596, 4294901760
  %1012 = vmatmul.f32.gmra.mxu0 %v1011
  %v1013 = vpop.f32.mrf.mxu0
  %v1014 = vadd.f32 %v789, %v1013
  %v1015 = vand.u32 %v599, 4294901760
  %1016 = vmatmul.f32.gmra.mxu0 %v1015
  %v1017 = vpop.f32.mrf.mxu0
  %v1018 = vadd.f32 %v797, %v1017
  %v1019 = vand.u32 %v602, 4294901760
  %1020 = vmatmul.f32.gmra.mxu0 %v1019
  %v1021 = vpop.f32.mrf.mxu0
  %v1022 = vadd.f32 %v805, %v1021
  %v1023 = vand.u32 %v605, 4294901760
  %1024 = vmatmul.f32.gmra.mxu0 %v1023
  %v1025 = vpop.f32.mrf.mxu0
  %v1026 = vadd.f32 %v813, %v1025
  %v1027 = vand.u32 %v608, 4294901760
  %1028 = vmatmul.f32.gmra.mxu0 %v1027
  %v1029 = vpop.f32.mrf.mxu0
  %v1030 = vadd.f32 %v821, %v1029
  %v1031 = vand.u32 %v611, 4294901760
  %1032 = vmatmul.f32.gmra.mxu0 %v1031
  %v1033 = vpop.f32.mrf.mxu0
  %v1034 = vadd.f32 %v829, %v1033
  %v1035 = vand.u32 %v614, 4294901760
  %1036 = vmatmul.f32.gmra.mxu0 %v1035
  %v1037 = vpop.f32.mrf.mxu0
  %v1038 = vadd.f32 %v837, %v1037
  %v1039 = vand.u32 %v617, 4294901760
  %1040 = vmatmul.f32.gmra.mxu0 %v1039
  %v1041 = vpop.f32.mrf.mxu0
  %v1042 = vadd.f32 %v845, %v1041
  %v1043 = vand.u32 %v620, 4294901760
  %1044 = vmatmul.f32.gmra.mxu0 %v1043
  %v1045 = vpop.f32.mrf.mxu0
  %v1046 = vadd.f32 %v853, %v1045
  %v1047 = vand.u32 %v623, 4294901760
  %1048 = vmatmul.f32.gmra.mxu0 %v1047
  %v1049 = vpop.f32.mrf.mxu0
  %v1050 = vadd.f32 %v861, %v1049
  %v1051 = vand.u32 %v626, 4294901760
  %1052 = vmatmul.f32.gmra.mxu0 %v1051
  %v1053 = vpop.f32.mrf.mxu0
  %v1054 = vadd.f32 %v869, %v1053
  %v1055 = vand.u32 %v629, 4294901760
  %1056 = vmatmul.f32.gmra.mxu0 %v1055
  %v1057 = vpop.f32.mrf.mxu0
  %v1058 = vadd.f32 %v877, %v1057
  %v1059 = vand.u32 %v632, 4294901760
  %1060 = vmatmul.f32.gmra.mxu0 %v1059
  %v1061 = vpop.f32.mrf.mxu0
  %v1062 = vadd.f32 %v885, %v1061
  %v1063 = vand.u32 %v635, 4294901760
  %1064 = vmatmul.f32.gmra.mxu0 %v1063
  %v1065 = vpop.f32.mrf.mxu0
  %v1066 = vadd.f32 %v893, %v1065
  %v1067 = vand.u32 %v638, 4294901760
  %1068 = vmatmul.f32.gmra.mxu0 %v1067
  %v1069 = vpop.f32.mrf.mxu0
  %v1070 = vadd.f32 %v901, %v1069
  %v1071 = vand.u32 %v641, 4294901760
  %1072 = vmatmul.f32.gmra.mxu0 %v1071
  %v1073 = vpop.f32.mrf.mxu0
  %v1074 = vadd.f32 %v909, %v1073
  %v1075 = vand.u32 %v644, 4294901760
  %1076 = vmatmul.f32.gmra.mxu0 %v1075
  %v1077 = vpop.f32.mrf.mxu0
  %v1078 = vadd.f32 %v917, %v1077
  %1079 = vdwg.mxu0
  %1080 = vmatpush.msra.mxu0 0.0
  %1081 = vmatpush.msra.mxu0 0.0
  %1082 = vmatpush.msra.mxu0 0.0
  %1083 = vmatpush.msra.mxu0 0.0
  %1084 = vmatpush.msra.mxu0 0.0
  %1085 = vmatpush.msra.mxu0 0.0
  %1086 = vmatpush.msra.mxu0 0.0
  %1087 = vmatpush.msra.mxu0 0.0
  %1088 = vmatpush.msra.mxu0 0.0
  %1089 = vmatpush.msra.mxu0 0.0
  %1090 = vmatpush.msra.mxu0 0.0
  %1091 = vmatpush.msra.mxu0 0.0
  %v1092 = vsub.f32 %v484, %v484
  %1093 = vmatpush.msra.mxu0 %v1092
  %v1094 = vsub.f32 %v483, %v483
  %1095 = vmatpush.msra.mxu0 %v1094
  %v1096 = vsub.f32 %v482, %v482
  %1097 = vmatpush.msra.mxu0 %v1096
  %v1098 = vsub.f32 %v481, %v481
  %1099 = vmatpush.msra.mxu0 %v1098
  %v1100 = vand.u32 %v551, 4294901760
  %v1101 = vsub.f32 %v551, %v1100
  %1102 = vmatmul.f32.gmra.mxu0 %v1101
  %v1103 = vpop.f32.mrf.mxu0
  %v1104 = vadd.f32 %v954, %v1103
  %v1105 = vand.u32 %v554, 4294901760
  %v1106 = vsub.f32 %v554, %v1105
  %1107 = vmatmul.f32.gmra.mxu0 %v1106
  %v1108 = vpop.f32.mrf.mxu0
  %v1109 = vadd.f32 %v958, %v1108
  %v1110 = vand.u32 %v557, 4294901760
  %v1111 = vsub.f32 %v557, %v1110
  %1112 = vmatmul.f32.gmra.mxu0 %v1111
  %v1113 = vpop.f32.mrf.mxu0
  %v1114 = vadd.f32 %v962, %v1113
  %v1115 = vand.u32 %v560, 4294901760
  %v1116 = vsub.f32 %v560, %v1115
  %1117 = vmatmul.f32.gmra.mxu0 %v1116
  %v1118 = vpop.f32.mrf.mxu0
  %v1119 = vadd.f32 %v966, %v1118
  %v1120 = vand.u32 %v563, 4294901760
  %v1121 = vsub.f32 %v563, %v1120
  %1122 = vmatmul.f32.gmra.mxu0 %v1121
  %v1123 = vpop.f32.mrf.mxu0
  %v1124 = vadd.f32 %v970, %v1123
  %v1125 = vand.u32 %v566, 4294901760
  %v1126 = vsub.f32 %v566, %v1125
  %1127 = vmatmul.f32.gmra.mxu0 %v1126
  %v1128 = vpop.f32.mrf.mxu0
  %v1129 = vadd.f32 %v974, %v1128
  %v1130 = vand.u32 %v569, 4294901760
  %v1131 = vsub.f32 %v569, %v1130
  %1132 = vmatmul.f32.gmra.mxu0 %v1131
  %v1133 = vpop.f32.mrf.mxu0
  %v1134 = vadd.f32 %v978, %v1133
  %v1135 = vand.u32 %v572, 4294901760
  %v1136 = vsub.f32 %v572, %v1135
  %1137 = vmatmul.f32.gmra.mxu0 %v1136
  %v1138 = vpop.f32.mrf.mxu0
  %v1139 = vadd.f32 %v982, %v1138
  %v1140 = vand.u32 %v575, 4294901760
  %v1141 = vsub.f32 %v575, %v1140
  %1142 = vmatmul.f32.gmra.mxu0 %v1141
  %v1143 = vpop.f32.mrf.mxu0
  %v1144 = vadd.f32 %v986, %v1143
  %v1145 = vand.u32 %v578, 4294901760
  %v1146 = vsub.f32 %v578, %v1145
  %1147 = vmatmul.f32.gmra.mxu0 %v1146
  %v1148 = vpop.f32.mrf.mxu0
  %v1149 = vadd.f32 %v990, %v1148
  %v1150 = vand.u32 %v581, 4294901760
  %v1151 = vsub.f32 %v581, %v1150
  %1152 = vmatmul.f32.gmra.mxu0 %v1151
  %v1153 = vpop.f32.mrf.mxu0
  %v1154 = vadd.f32 %v994, %v1153
  %v1155 = vand.u32 %v584, 4294901760
  %v1156 = vsub.f32 %v584, %v1155
  %1157 = vmatmul.f32.gmra.mxu0 %v1156
  %v1158 = vpop.f32.mrf.mxu0
  %v1159 = vadd.f32 %v998, %v1158
  %v1160 = vand.u32 %v587, 4294901760
  %v1161 = vsub.f32 %v587, %v1160
  %1162 = vmatmul.f32.gmra.mxu0 %v1161
  %v1163 = vpop.f32.mrf.mxu0
  %v1164 = vadd.f32 %v1002, %v1163
  %v1165 = vand.u32 %v590, 4294901760
  %v1166 = vsub.f32 %v590, %v1165
  %1167 = vmatmul.f32.gmra.mxu0 %v1166
  %v1168 = vpop.f32.mrf.mxu0
  %v1169 = vadd.f32 %v1006, %v1168
  %v1170 = vand.u32 %v593, 4294901760
  %v1171 = vsub.f32 %v593, %v1170
  %1172 = vmatmul.f32.gmra.mxu0 %v1171
  %v1173 = vpop.f32.mrf.mxu0
  %v1174 = vadd.f32 %v1010, %v1173
  %v1175 = vand.u32 %v596, 4294901760
  %v1176 = vsub.f32 %v596, %v1175
  %1177 = vmatmul.f32.gmra.mxu0 %v1176
  %v1178 = vpop.f32.mrf.mxu0
  %v1179 = vadd.f32 %v1014, %v1178
  %v1180 = vand.u32 %v599, 4294901760
  %v1181 = vsub.f32 %v599, %v1180
  %1182 = vmatmul.f32.gmra.mxu0 %v1181
  %v1183 = vpop.f32.mrf.mxu0
  %v1184 = vadd.f32 %v1018, %v1183
  %v1185 = vand.u32 %v602, 4294901760
  %v1186 = vsub.f32 %v602, %v1185
  %1187 = vmatmul.f32.gmra.mxu0 %v1186
  %v1188 = vpop.f32.mrf.mxu0
  %v1189 = vadd.f32 %v1022, %v1188
  %v1190 = vand.u32 %v605, 4294901760
  %v1191 = vsub.f32 %v605, %v1190
  %1192 = vmatmul.f32.gmra.mxu0 %v1191
  %v1193 = vpop.f32.mrf.mxu0
  %v1194 = vadd.f32 %v1026, %v1193
  %v1195 = vand.u32 %v608, 4294901760
  %v1196 = vsub.f32 %v608, %v1195
  %1197 = vmatmul.f32.gmra.mxu0 %v1196
  %v1198 = vpop.f32.mrf.mxu0
  %v1199 = vadd.f32 %v1030, %v1198
  %v1200 = vand.u32 %v611, 4294901760
  %v1201 = vsub.f32 %v611, %v1200
  %1202 = vmatmul.f32.gmra.mxu0 %v1201
  %v1203 = vpop.f32.mrf.mxu0
  %v1204 = vadd.f32 %v1034, %v1203
  %v1205 = vand.u32 %v614, 4294901760
  %v1206 = vsub.f32 %v614, %v1205
  %1207 = vmatmul.f32.gmra.mxu0 %v1206
  %v1208 = vpop.f32.mrf.mxu0
  %v1209 = vadd.f32 %v1038, %v1208
  %v1210 = vand.u32 %v617, 4294901760
  %v1211 = vsub.f32 %v617, %v1210
  %1212 = vmatmul.f32.gmra.mxu0 %v1211
  %v1213 = vpop.f32.mrf.mxu0
  %v1214 = vadd.f32 %v1042, %v1213
  %v1215 = vand.u32 %v620, 4294901760
  %v1216 = vsub.f32 %v620, %v1215
  %1217 = vmatmul.f32.gmra.mxu0 %v1216
  %v1218 = vpop.f32.mrf.mxu0
  %v1219 = vadd.f32 %v1046, %v1218
  %v1220 = vand.u32 %v623, 4294901760
  %v1221 = vsub.f32 %v623, %v1220
  %1222 = vmatmul.f32.gmra.mxu0 %v1221
  %v1223 = vpop.f32.mrf.mxu0
  %v1224 = vadd.f32 %v1050, %v1223
  %v1225 = vand.u32 %v626, 4294901760
  %v1226 = vsub.f32 %v626, %v1225
  %1227 = vmatmul.f32.gmra.mxu0 %v1226
  %v1228 = vpop.f32.mrf.mxu0
  %v1229 = vadd.f32 %v1054, %v1228
  %v1230 = vand.u32 %v629, 4294901760
  %v1231 = vsub.f32 %v629, %v1230
  %1232 = vmatmul.f32.gmra.mxu0 %v1231
  %v1233 = vpop.f32.mrf.mxu0
  %v1234 = vadd.f32 %v1058, %v1233
  %v1235 = vand.u32 %v632, 4294901760
  %v1236 = vsub.f32 %v632, %v1235
  %1237 = vmatmul.f32.gmra.mxu0 %v1236
  %v1238 = vpop.f32.mrf.mxu0
  %v1239 = vadd.f32 %v1062, %v1238
  %v1240 = vand.u32 %v635, 4294901760
  %v1241 = vsub.f32 %v635, %v1240
  %1242 = vmatmul.f32.gmra.mxu0 %v1241
  %v1243 = vpop.f32.mrf.mxu0
  %v1244 = vadd.f32 %v1066, %v1243
  %v1245 = vand.u32 %v638, 4294901760
  %v1246 = vsub.f32 %v638, %v1245
  %1247 = vmatmul.f32.gmra.mxu0 %v1246
  %v1248 = vpop.f32.mrf.mxu0
  %v1249 = vadd.f32 %v1070, %v1248
  %v1250 = vand.u32 %v641, 4294901760
  %v1251 = vsub.f32 %v641, %v1250
  %1252 = vmatmul.f32.gmra.mxu0 %v1251
  %v1253 = vpop.f32.mrf.mxu0
  %v1254 = vadd.f32 %v1074, %v1253
  %v1255 = vand.u32 %v644, 4294901760
  %v1256 = vsub.f32 %v644, %v1255
  %1257 = vmatmul.f32.gmra.mxu0 %v1256
  %v1258 = vpop.f32.mrf.mxu0
  %v1259 = vadd.f32 %v1078, %v1258
  %1260 = vdwg.mxu0
  %1261 = vmatpush.msra.mxu0 0.0
  %1262 = vmatpush.msra.mxu0 0.0
  %1263 = vmatpush.msra.mxu0 0.0
  %1264 = vmatpush.msra.mxu0 0.0
  %1265 = vmatpush.msra.mxu0 0.0
  %1266 = vmatpush.msra.mxu0 0.0
  %1267 = vmatpush.msra.mxu0 0.0
  %1268 = vmatpush.msra.mxu0 0.0
  %1269 = vmatpush.msra.mxu0 0.0
  %1270 = vmatpush.msra.mxu0 0.0
  %1271 = vmatpush.msra.mxu0 0.0
  %1272 = vmatpush.msra.mxu0 0.0
  %1273 = vmatpush.msra.mxu0 %v484
  %1274 = vmatpush.msra.mxu0 %v483
  %1275 = vmatpush.msra.mxu0 %v482
  %1276 = vmatpush.msra.mxu0 %v481
  %v1277 = vand.u32 %v551, 4294901760
  %v1278 = vsub.f32 %v551, %v1277
  %v1279 = vand.u32 %v1278, 4294901760
  %1280 = vmatmul.f32.gmra.mxu0 %v1279
  %v1281 = vpop.f32.mrf.mxu0
  %v1282 = vadd.f32 %v1104, %v1281
  %v1283 = vand.u32 %v554, 4294901760
  %v1284 = vsub.f32 %v554, %v1283
  %v1285 = vand.u32 %v1284, 4294901760
  %1286 = vmatmul.f32.gmra.mxu0 %v1285
  %v1287 = vpop.f32.mrf.mxu0
  %v1288 = vadd.f32 %v1109, %v1287
  %v1289 = vand.u32 %v557, 4294901760
  %v1290 = vsub.f32 %v557, %v1289
  %v1291 = vand.u32 %v1290, 4294901760
  %1292 = vmatmul.f32.gmra.mxu0 %v1291
  %v1293 = vpop.f32.mrf.mxu0
  %v1294 = vadd.f32 %v1114, %v1293
  %v1295 = vand.u32 %v560, 4294901760
  %v1296 = vsub.f32 %v560, %v1295
  %v1297 = vand.u32 %v1296, 4294901760
  %1298 = vmatmul.f32.gmra.mxu0 %v1297
  %v1299 = vpop.f32.mrf.mxu0
  %v1300 = vadd.f32 %v1119, %v1299
  %v1301 = vand.u32 %v563, 4294901760
  %v1302 = vsub.f32 %v563, %v1301
  %v1303 = vand.u32 %v1302, 4294901760
  %1304 = vmatmul.f32.gmra.mxu0 %v1303
  %v1305 = vpop.f32.mrf.mxu0
  %v1306 = vadd.f32 %v1124, %v1305
  %v1307 = vand.u32 %v566, 4294901760
  %v1308 = vsub.f32 %v566, %v1307
  %v1309 = vand.u32 %v1308, 4294901760
  %1310 = vmatmul.f32.gmra.mxu0 %v1309
  %v1311 = vpop.f32.mrf.mxu0
  %v1312 = vadd.f32 %v1129, %v1311
  %v1313 = vand.u32 %v569, 4294901760
  %v1314 = vsub.f32 %v569, %v1313
  %v1315 = vand.u32 %v1314, 4294901760
  %1316 = vmatmul.f32.gmra.mxu0 %v1315
  %v1317 = vpop.f32.mrf.mxu0
  %v1318 = vadd.f32 %v1134, %v1317
  %v1319 = vand.u32 %v572, 4294901760
  %v1320 = vsub.f32 %v572, %v1319
  %v1321 = vand.u32 %v1320, 4294901760
  %1322 = vmatmul.f32.gmra.mxu0 %v1321
  %v1323 = vpop.f32.mrf.mxu0
  %v1324 = vadd.f32 %v1139, %v1323
  %v1325 = vand.u32 %v575, 4294901760
  %v1326 = vsub.f32 %v575, %v1325
  %v1327 = vand.u32 %v1326, 4294901760
  %1328 = vmatmul.f32.gmra.mxu0 %v1327
  %v1329 = vpop.f32.mrf.mxu0
  %v1330 = vadd.f32 %v1144, %v1329
  %v1331 = vand.u32 %v578, 4294901760
  %v1332 = vsub.f32 %v578, %v1331
  %v1333 = vand.u32 %v1332, 4294901760
  %1334 = vmatmul.f32.gmra.mxu0 %v1333
  %v1335 = vpop.f32.mrf.mxu0
  %v1336 = vadd.f32 %v1149, %v1335
  %v1337 = vand.u32 %v581, 4294901760
  %v1338 = vsub.f32 %v581, %v1337
  %v1339 = vand.u32 %v1338, 4294901760
  %1340 = vmatmul.f32.gmra.mxu0 %v1339
  %v1341 = vpop.f32.mrf.mxu0
  %v1342 = vadd.f32 %v1154, %v1341
  %v1343 = vand.u32 %v584, 4294901760
  %v1344 = vsub.f32 %v584, %v1343
  %v1345 = vand.u32 %v1344, 4294901760
  %1346 = vmatmul.f32.gmra.mxu0 %v1345
  %v1347 = vpop.f32.mrf.mxu0
  %v1348 = vadd.f32 %v1159, %v1347
  %v1349 = vand.u32 %v587, 4294901760
  %v1350 = vsub.f32 %v587, %v1349
  %v1351 = vand.u32 %v1350, 4294901760
  %1352 = vmatmul.f32.gmra.mxu0 %v1351
  %v1353 = vpop.f32.mrf.mxu0
  %v1354 = vadd.f32 %v1164, %v1353
  %v1355 = vand.u32 %v590, 4294901760
  %v1356 = vsub.f32 %v590, %v1355
  %v1357 = vand.u32 %v1356, 4294901760
  %1358 = vmatmul.f32.gmra.mxu0 %v1357
  %v1359 = vpop.f32.mrf.mxu0
  %v1360 = vadd.f32 %v1169, %v1359
  %v1361 = vand.u32 %v593, 4294901760
  %v1362 = vsub.f32 %v593, %v1361
  %v1363 = vand.u32 %v1362, 4294901760
  %1364 = vmatmul.f32.gmra.mxu0 %v1363
  %v1365 = vpop.f32.mrf.mxu0
  %v1366 = vadd.f32 %v1174, %v1365
  %v1367 = vand.u32 %v596, 4294901760
  %v1368 = vsub.f32 %v596, %v1367
  %v1369 = vand.u32 %v1368, 4294901760
  %1370 = vmatmul.f32.gmra.mxu0 %v1369
  %v1371 = vpop.f32.mrf.mxu0
  %v1372 = vadd.f32 %v1179, %v1371
  %v1373 = vand.u32 %v599, 4294901760
  %v1374 = vsub.f32 %v599, %v1373
  %v1375 = vand.u32 %v1374, 4294901760
  %1376 = vmatmul.f32.gmra.mxu0 %v1375
  %v1377 = vpop.f32.mrf.mxu0
  %v1378 = vadd.f32 %v1184, %v1377
  %v1379 = vand.u32 %v602, 4294901760
  %v1380 = vsub.f32 %v602, %v1379
  %v1381 = vand.u32 %v1380, 4294901760
  %1382 = vmatmul.f32.gmra.mxu0 %v1381
  %v1383 = vpop.f32.mrf.mxu0
  %v1384 = vadd.f32 %v1189, %v1383
  %v1385 = vand.u32 %v605, 4294901760
  %v1386 = vsub.f32 %v605, %v1385
  %v1387 = vand.u32 %v1386, 4294901760
  %1388 = vmatmul.f32.gmra.mxu0 %v1387
  %v1389 = vpop.f32.mrf.mxu0
  %v1390 = vadd.f32 %v1194, %v1389
  %v1391 = vand.u32 %v608, 4294901760
  %v1392 = vsub.f32 %v608, %v1391
  %v1393 = vand.u32 %v1392, 4294901760
  %1394 = vmatmul.f32.gmra.mxu0 %v1393
  %v1395 = vpop.f32.mrf.mxu0
  %v1396 = vadd.f32 %v1199, %v1395
  %v1397 = vand.u32 %v611, 4294901760
  %v1398 = vsub.f32 %v611, %v1397
  %v1399 = vand.u32 %v1398, 4294901760
  %1400 = vmatmul.f32.gmra.mxu0 %v1399
  %v1401 = vpop.f32.mrf.mxu0
  %v1402 = vadd.f32 %v1204, %v1401
  %v1403 = vand.u32 %v614, 4294901760
  %v1404 = vsub.f32 %v614, %v1403
  %v1405 = vand.u32 %v1404, 4294901760
  %1406 = vmatmul.f32.gmra.mxu0 %v1405
  %v1407 = vpop.f32.mrf.mxu0
  %v1408 = vadd.f32 %v1209, %v1407
  %v1409 = vand.u32 %v617, 4294901760
  %v1410 = vsub.f32 %v617, %v1409
  %v1411 = vand.u32 %v1410, 4294901760
  %1412 = vmatmul.f32.gmra.mxu0 %v1411
  %v1413 = vpop.f32.mrf.mxu0
  %v1414 = vadd.f32 %v1214, %v1413
  %v1415 = vand.u32 %v620, 4294901760
  %v1416 = vsub.f32 %v620, %v1415
  %v1417 = vand.u32 %v1416, 4294901760
  %1418 = vmatmul.f32.gmra.mxu0 %v1417
  %v1419 = vpop.f32.mrf.mxu0
  %v1420 = vadd.f32 %v1219, %v1419
  %v1421 = vand.u32 %v623, 4294901760
  %v1422 = vsub.f32 %v623, %v1421
  %v1423 = vand.u32 %v1422, 4294901760
  %1424 = vmatmul.f32.gmra.mxu0 %v1423
  %v1425 = vpop.f32.mrf.mxu0
  %v1426 = vadd.f32 %v1224, %v1425
  %v1427 = vand.u32 %v626, 4294901760
  %v1428 = vsub.f32 %v626, %v1427
  %v1429 = vand.u32 %v1428, 4294901760
  %1430 = vmatmul.f32.gmra.mxu0 %v1429
  %v1431 = vpop.f32.mrf.mxu0
  %v1432 = vadd.f32 %v1229, %v1431
  %v1433 = vand.u32 %v629, 4294901760
  %v1434 = vsub.f32 %v629, %v1433
  %v1435 = vand.u32 %v1434, 4294901760
  %1436 = vmatmul.f32.gmra.mxu0 %v1435
  %v1437 = vpop.f32.mrf.mxu0
  %v1438 = vadd.f32 %v1234, %v1437
  %v1439 = vand.u32 %v632, 4294901760
  %v1440 = vsub.f32 %v632, %v1439
  %v1441 = vand.u32 %v1440, 4294901760
  %1442 = vmatmul.f32.gmra.mxu0 %v1441
  %v1443 = vpop.f32.mrf.mxu0
  %v1444 = vadd.f32 %v1239, %v1443
  %v1445 = vand.u32 %v635, 4294901760
  %v1446 = vsub.f32 %v635, %v1445
  %v1447 = vand.u32 %v1446, 4294901760
  %1448 = vmatmul.f32.gmra.mxu0 %v1447
  %v1449 = vpop.f32.mrf.mxu0
  %v1450 = vadd.f32 %v1244, %v1449
  %v1451 = vand.u32 %v638, 4294901760
  %v1452 = vsub.f32 %v638, %v1451
  %v1453 = vand.u32 %v1452, 4294901760
  %1454 = vmatmul.f32.gmra.mxu0 %v1453
  %v1455 = vpop.f32.mrf.mxu0
  %v1456 = vadd.f32 %v1249, %v1455
  %v1457 = vand.u32 %v641, 4294901760
  %v1458 = vsub.f32 %v641, %v1457
  %v1459 = vand.u32 %v1458, 4294901760
  %1460 = vmatmul.f32.gmra.mxu0 %v1459
  %v1461 = vpop.f32.mrf.mxu0
  %v1462 = vadd.f32 %v1254, %v1461
  %v1463 = vand.u32 %v644, 4294901760
  %v1464 = vsub.f32 %v644, %v1463
  %v1465 = vand.u32 %v1464, 4294901760
  %1466 = vmatmul.f32.gmra.mxu0 %v1465
  %v1467 = vpop.f32.mrf.mxu0
  %v1468 = vadd.f32 %v1259, %v1467
  %1469 = vdwg.mxu0
  %1470 = vmatpush.msra.mxu0 0.0
  %1471 = vmatpush.msra.mxu0 0.0
  %1472 = vmatpush.msra.mxu0 0.0
  %1473 = vmatpush.msra.mxu0 0.0
  %1474 = vmatpush.msra.mxu0 0.0
  %1475 = vmatpush.msra.mxu0 0.0
  %1476 = vmatpush.msra.mxu0 0.0
  %1477 = vmatpush.msra.mxu0 0.0
  %1478 = vmatpush.msra.mxu0 0.0
  %1479 = vmatpush.msra.mxu0 0.0
  %1480 = vmatpush.msra.mxu0 0.0
  %1481 = vmatpush.msra.mxu0 0.0
  %v1482 = vsub.f32 %v484, %v484
  %v1483 = vand.u32 %v1482, 4294901760
  %1484 = vmatpush.msra.mxu0 %v1483
  %v1485 = vsub.f32 %v483, %v483
  %v1486 = vand.u32 %v1485, 4294901760
  %1487 = vmatpush.msra.mxu0 %v1486
  %v1488 = vsub.f32 %v482, %v482
  %v1489 = vand.u32 %v1488, 4294901760
  %1490 = vmatpush.msra.mxu0 %v1489
  %v1491 = vsub.f32 %v481, %v481
  %v1492 = vand.u32 %v1491, 4294901760
  %1493 = vmatpush.msra.mxu0 %v1492
  %v1494 = vand.u32 %v551, 4294901760
  %1495 = vmatmul.f32.gmra.mxu0 %v1494
  %v1496 = vpop.f32.mrf.mxu0
  %v1497 = vadd.f32 %v1282, %v1496
  %v1498 = vand.u32 %v554, 4294901760
  %1499 = vmatmul.f32.gmra.mxu0 %v1498
  %v1500 = vpop.f32.mrf.mxu0
  %v1501 = vadd.f32 %v1288, %v1500
  %v1502 = vand.u32 %v557, 4294901760
  %1503 = vmatmul.f32.gmra.mxu0 %v1502
  %v1504 = vpop.f32.mrf.mxu0
  %v1505 = vadd.f32 %v1294, %v1504
  %v1506 = vand.u32 %v560, 4294901760
  %1507 = vmatmul.f32.gmra.mxu0 %v1506
  %v1508 = vpop.f32.mrf.mxu0
  %v1509 = vadd.f32 %v1300, %v1508
  %v1510 = vand.u32 %v563, 4294901760
  %1511 = vmatmul.f32.gmra.mxu0 %v1510
  %v1512 = vpop.f32.mrf.mxu0
  %v1513 = vadd.f32 %v1306, %v1512
  %v1514 = vand.u32 %v566, 4294901760
  %1515 = vmatmul.f32.gmra.mxu0 %v1514
  %v1516 = vpop.f32.mrf.mxu0
  %v1517 = vadd.f32 %v1312, %v1516
  %v1518 = vand.u32 %v569, 4294901760
  %1519 = vmatmul.f32.gmra.mxu0 %v1518
  %v1520 = vpop.f32.mrf.mxu0
  %v1521 = vadd.f32 %v1318, %v1520
  %v1522 = vand.u32 %v572, 4294901760
  %1523 = vmatmul.f32.gmra.mxu0 %v1522
  %v1524 = vpop.f32.mrf.mxu0
  %v1525 = vadd.f32 %v1324, %v1524
  %v1526 = vand.u32 %v575, 4294901760
  %1527 = vmatmul.f32.gmra.mxu0 %v1526
  %v1528 = vpop.f32.mrf.mxu0
  %v1529 = vadd.f32 %v1330, %v1528
  %v1530 = vand.u32 %v578, 4294901760
  %1531 = vmatmul.f32.gmra.mxu0 %v1530
  %v1532 = vpop.f32.mrf.mxu0
  %v1533 = vadd.f32 %v1336, %v1532
  %v1534 = vand.u32 %v581, 4294901760
  %1535 = vmatmul.f32.gmra.mxu0 %v1534
  %v1536 = vpop.f32.mrf.mxu0
  %v1537 = vadd.f32 %v1342, %v1536
  %v1538 = vand.u32 %v584, 4294901760
  %1539 = vmatmul.f32.gmra.mxu0 %v1538
  %v1540 = vpop.f32.mrf.mxu0
  %v1541 = vadd.f32 %v1348, %v1540
  %v1542 = vand.u32 %v587, 4294901760
  %1543 = vmatmul.f32.gmra.mxu0 %v1542
  %v1544 = vpop.f32.mrf.mxu0
  %v1545 = vadd.f32 %v1354, %v1544
  %v1546 = vand.u32 %v590, 4294901760
  %1547 = vmatmul.f32.gmra.mxu0 %v1546
  %v1548 = vpop.f32.mrf.mxu0
  %v1549 = vadd.f32 %v1360, %v1548
  %v1550 = vand.u32 %v593, 4294901760
  %1551 = vmatmul.f32.gmra.mxu0 %v1550
  %v1552 = vpop.f32.mrf.mxu0
  %v1553 = vadd.f32 %v1366, %v1552
  %v1554 = vand.u32 %v596, 4294901760
  %1555 = vmatmul.f32.gmra.mxu0 %v1554
  %v1556 = vpop.f32.mrf.mxu0
  %v1557 = vadd.f32 %v1372, %v1556
  %v1558 = vand.u32 %v599, 4294901760
  %1559 = vmatmul.f32.gmra.mxu0 %v1558
  %v1560 = vpop.f32.mrf.mxu0
  %v1561 = vadd.f32 %v1378, %v1560
  %v1562 = vand.u32 %v602, 4294901760
  %1563 = vmatmul.f32.gmra.mxu0 %v1562
  %v1564 = vpop.f32.mrf.mxu0
  %v1565 = vadd.f32 %v1384, %v1564
  %v1566 = vand.u32 %v605, 4294901760
  %1567 = vmatmul.f32.gmra.mxu0 %v1566
  %v1568 = vpop.f32.mrf.mxu0
  %v1569 = vadd.f32 %v1390, %v1568
  %v1570 = vand.u32 %v608, 4294901760
  %1571 = vmatmul.f32.gmra.mxu0 %v1570
  %v1572 = vpop.f32.mrf.mxu0
  %v1573 = vadd.f32 %v1396, %v1572
  %v1574 = vand.u32 %v611, 4294901760
  %1575 = vmatmul.f32.gmra.mxu0 %v1574
  %v1576 = vpop.f32.mrf.mxu0
  %v1577 = vadd.f32 %v1402, %v1576
  %v1578 = vand.u32 %v614, 4294901760
  %1579 = vmatmul.f32.gmra.mxu0 %v1578
  %v1580 = vpop.f32.mrf.mxu0
  %v1581 = vadd.f32 %v1408, %v1580
  %v1582 = vand.u32 %v617, 4294901760
  %1583 = vmatmul.f32.gmra.mxu0 %v1582
  %v1584 = vpop.f32.mrf.mxu0
  %v1585 = vadd.f32 %v1414, %v1584
  %v1586 = vand.u32 %v620, 4294901760
  %1587 = vmatmul.f32.gmra.mxu0 %v1586
  %v1588 = vpop.f32.mrf.mxu0
  %v1589 = vadd.f32 %v1420, %v1588
  %v1590 = vand.u32 %v623, 4294901760
  %1591 = vmatmul.f32.gmra.mxu0 %v1590
  %v1592 = vpop.f32.mrf.mxu0
  %v1593 = vadd.f32 %v1426, %v1592
  %v1594 = vand.u32 %v626, 4294901760
  %1595 = vmatmul.f32.gmra.mxu0 %v1594
  %v1596 = vpop.f32.mrf.mxu0
  %v1597 = vadd.f32 %v1432, %v1596
  %v1598 = vand.u32 %v629, 4294901760
  %1599 = vmatmul.f32.gmra.mxu0 %v1598
  %v1600 = vpop.f32.mrf.mxu0
  %v1601 = vadd.f32 %v1438, %v1600
  %v1602 = vand.u32 %v632, 4294901760
  %1603 = vmatmul.f32.gmra.mxu0 %v1602
  %v1604 = vpop.f32.mrf.mxu0
  %v1605 = vadd.f32 %v1444, %v1604
  %v1606 = vand.u32 %v635, 4294901760
  %1607 = vmatmul.f32.gmra.mxu0 %v1606
  %v1608 = vpop.f32.mrf.mxu0
  %v1609 = vadd.f32 %v1450, %v1608
  %v1610 = vand.u32 %v638, 4294901760
  %1611 = vmatmul.f32.gmra.mxu0 %v1610
  %v1612 = vpop.f32.mrf.mxu0
  %v1613 = vadd.f32 %v1456, %v1612
  %v1614 = vand.u32 %v641, 4294901760
  %1615 = vmatmul.f32.gmra.mxu0 %v1614
  %v1616 = vpop.f32.mrf.mxu0
  %v1617 = vadd.f32 %v1462, %v1616
  %v1618 = vand.u32 %v644, 4294901760
  %1619 = vmatmul.f32.gmra.mxu0 %v1618
  %v1620 = vpop.f32.mrf.mxu0
  %v1621 = vadd.f32 %v1468, %v1620
  %1622 = vdwg.mxu0
  %1623 = vmatpush.msra.mxu0 0.0
  %1624 = vmatpush.msra.mxu0 0.0
  %1625 = vmatpush.msra.mxu0 0.0
  %1626 = vmatpush.msra.mxu0 0.0
  %1627 = vmatpush.msra.mxu0 0.0
  %1628 = vmatpush.msra.mxu0 0.0
  %1629 = vmatpush.msra.mxu0 0.0
  %1630 = vmatpush.msra.mxu0 0.0
  %1631 = vmatpush.msra.mxu0 0.0
  %1632 = vmatpush.msra.mxu0 0.0
  %1633 = vmatpush.msra.mxu0 0.0
  %1634 = vmatpush.msra.mxu0 0.0
  %1635 = vmatpush.msra.mxu0 %v484
  %1636 = vmatpush.msra.mxu0 %v483
  %1637 = vmatpush.msra.mxu0 %v482
  %1638 = vmatpush.msra.mxu0 %v481
  %v1639 = vand.u32 %v551, 4294901760
  %1640 = vmatmul.f32.gmra.mxu0 %v1639
  %v1641 = vpop.f32.mrf.mxu0
  %v1642 = vadd.f32 %v1497, %v1641
  %v1643 = vand.u32 %v554, 4294901760
  %1644 = vmatmul.f32.gmra.mxu0 %v1643
  %v1645 = vpop.f32.mrf.mxu0
  %v1646 = vadd.f32 %v1501, %v1645
  %v1647 = vand.u32 %v557, 4294901760
  %1648 = vmatmul.f32.gmra.mxu0 %v1647
  %v1649 = vpop.f32.mrf.mxu0
  %v1650 = vadd.f32 %v1505, %v1649
  %v1651 = vand.u32 %v560, 4294901760
  %1652 = vmatmul.f32.gmra.mxu0 %v1651
  %v1653 = vpop.f32.mrf.mxu0
  %v1654 = vadd.f32 %v1509, %v1653
  %v1655 = vand.u32 %v563, 4294901760
  %1656 = vmatmul.f32.gmra.mxu0 %v1655
  %v1657 = vpop.f32.mrf.mxu0
  %v1658 = vadd.f32 %v1513, %v1657
  %v1659 = vand.u32 %v566, 4294901760
  %1660 = vmatmul.f32.gmra.mxu0 %v1659
  %v1661 = vpop.f32.mrf.mxu0
  %v1662 = vadd.f32 %v1517, %v1661
  %v1663 = vand.u32 %v569, 4294901760
  %1664 = vmatmul.f32.gmra.mxu0 %v1663
  %v1665 = vpop.f32.mrf.mxu0
  %v1666 = vadd.f32 %v1521, %v1665
  %v1667 = vand.u32 %v572, 4294901760
  %1668 = vmatmul.f32.gmra.mxu0 %v1667
  %v1669 = vpop.f32.mrf.mxu0
  %v1670 = vadd.f32 %v1525, %v1669
  %v1671 = vand.u32 %v575, 4294901760
  %1672 = vmatmul.f32.gmra.mxu0 %v1671
  %v1673 = vpop.f32.mrf.mxu0
  %v1674 = vadd.f32 %v1529, %v1673
  %v1675 = vand.u32 %v578, 4294901760
  %1676 = vmatmul.f32.gmra.mxu0 %v1675
  %v1677 = vpop.f32.mrf.mxu0
  %v1678 = vadd.f32 %v1533, %v1677
  %v1679 = vand.u32 %v581, 4294901760
  %1680 = vmatmul.f32.gmra.mxu0 %v1679
  %v1681 = vpop.f32.mrf.mxu0
  %v1682 = vadd.f32 %v1537, %v1681
  %v1683 = vand.u32 %v584, 4294901760
  %1684 = vmatmul.f32.gmra.mxu0 %v1683
  %v1685 = vpop.f32.mrf.mxu0
  %v1686 = vadd.f32 %v1541, %v1685
  %v1687 = vand.u32 %v587, 4294901760
  %1688 = vmatmul.f32.gmra.mxu0 %v1687
  %v1689 = vpop.f32.mrf.mxu0
  %v1690 = vadd.f32 %v1545, %v1689
  %v1691 = vand.u32 %v590, 4294901760
  %1692 = vmatmul.f32.gmra.mxu0 %v1691
  %v1693 = vpop.f32.mrf.mxu0
  %v1694 = vadd.f32 %v1549, %v1693
  %v1695 = vand.u32 %v593, 4294901760
  %1696 = vmatmul.f32.gmra.mxu0 %v1695
  %v1697 = vpop.f32.mrf.mxu0
  %v1698 = vadd.f32 %v1553, %v1697
  %v1699 = vand.u32 %v596, 4294901760
  %1700 = vmatmul.f32.gmra.mxu0 %v1699
  %v1701 = vpop.f32.mrf.mxu0
  %v1702 = vadd.f32 %v1557, %v1701
  %v1703 = vand.u32 %v599, 4294901760
  %1704 = vmatmul.f32.gmra.mxu0 %v1703
  %v1705 = vpop.f32.mrf.mxu0
  %v1706 = vadd.f32 %v1561, %v1705
  %v1707 = vand.u32 %v602, 4294901760
  %1708 = vmatmul.f32.gmra.mxu0 %v1707
  %v1709 = vpop.f32.mrf.mxu0
  %v1710 = vadd.f32 %v1565, %v1709
  %v1711 = vand.u32 %v605, 4294901760
  %1712 = vmatmul.f32.gmra.mxu0 %v1711
  %v1713 = vpop.f32.mrf.mxu0
  %v1714 = vadd.f32 %v1569, %v1713
  %v1715 = vand.u32 %v608, 4294901760
  %1716 = vmatmul.f32.gmra.mxu0 %v1715
  %v1717 = vpop.f32.mrf.mxu0
  %v1718 = vadd.f32 %v1573, %v1717
  %v1719 = vand.u32 %v611, 4294901760
  %1720 = vmatmul.f32.gmra.mxu0 %v1719
  %v1721 = vpop.f32.mrf.mxu0
  %v1722 = vadd.f32 %v1577, %v1721
  %v1723 = vand.u32 %v614, 4294901760
  %1724 = vmatmul.f32.gmra.mxu0 %v1723
  %v1725 = vpop.f32.mrf.mxu0
  %v1726 = vadd.f32 %v1581, %v1725
  %v1727 = vand.u32 %v617, 4294901760
  %1728 = vmatmul.f32.gmra.mxu0 %v1727
  %v1729 = vpop.f32.mrf.mxu0
  %v1730 = vadd.f32 %v1585, %v1729
  %v1731 = vand.u32 %v620, 4294901760
  %1732 = vmatmul.f32.gmra.mxu0 %v1731
  %v1733 = vpop.f32.mrf.mxu0
  %v1734 = vadd.f32 %v1589, %v1733
  %v1735 = vand.u32 %v623, 4294901760
  %1736 = vmatmul.f32.gmra.mxu0 %v1735
  %v1737 = vpop.f32.mrf.mxu0
  %v1738 = vadd.f32 %v1593, %v1737
  %v1739 = vand.u32 %v626, 4294901760
  %1740 = vmatmul.f32.gmra.mxu0 %v1739
  %v1741 = vpop.f32.mrf.mxu0
  %v1742 = vadd.f32 %v1597, %v1741
  %v1743 = vand.u32 %v629, 4294901760
  %1744 = vmatmul.f32.gmra.mxu0 %v1743
  %v1745 = vpop.f32.mrf.mxu0
  %v1746 = vadd.f32 %v1601, %v1745
  %v1747 = vand.u32 %v632, 4294901760
  %1748 = vmatmul.f32.gmra.mxu0 %v1747
  %v1749 = vpop.f32.mrf.mxu0
  %v1750 = vadd.f32 %v1605, %v1749
  %v1751 = vand.u32 %v635, 4294901760
  %1752 = vmatmul.f32.gmra.mxu0 %v1751
  %v1753 = vpop.f32.mrf.mxu0
  %v1754 = vadd.f32 %v1609, %v1753
  %v1755 = vand.u32 %v638, 4294901760
  %1756 = vmatmul.f32.gmra.mxu0 %v1755
  %v1757 = vpop.f32.mrf.mxu0
  %v1758 = vadd.f32 %v1613, %v1757
  %v1759 = vand.u32 %v641, 4294901760
  %1760 = vmatmul.f32.gmra.mxu0 %v1759
  %v1761 = vpop.f32.mrf.mxu0
  %v1762 = vadd.f32 %v1617, %v1761
  %v1763 = vand.u32 %v644, 4294901760
  %1764 = vmatmul.f32.gmra.mxu0 %v1763
  %v1765 = vpop.f32.mrf.mxu0
  %v1766 = vadd.f32 %v1621, %v1765
  %1767 = vdwg.mxu0
  %1768 = vst.msk [vmem:[%s2] sm:$0xff] %vm549, %v1642
  %1769 = vst.msk [vmem:[%s2 + $0x8] sm:$0xff] %vm549, %v1646
  %1770 = vst.msk [vmem:[%s2 + $0x10] sm:$0xff] %vm549, %v1650
  %1771 = vst.msk [vmem:[%s2 + $0x18] sm:$0xff] %vm549, %v1654
  %1772 = vst.msk [vmem:[%s2 + $0x20] sm:$0xff] %vm549, %v1658
  %1773 = vst.msk [vmem:[%s2 + $0x28] sm:$0xff] %vm549, %v1662
  %1774 = vst.msk [vmem:[%s2 + $0x30] sm:$0xff] %vm549, %v1666
  %1775 = vst.msk [vmem:[%s2 + $0x38] sm:$0xff] %vm549, %v1670
  %1776 = vst.msk [vmem:[%s2 + $0x40] sm:$0xff] %vm549, %v1674
  %1777 = vst.msk [vmem:[%s2 + $0x48] sm:$0xff] %vm549, %v1678
  %1778 = vst.msk [vmem:[%s2 + $0x50] sm:$0xff] %vm549, %v1682
  %1779 = vst.msk [vmem:[%s2 + $0x58] sm:$0xff] %vm549, %v1686
  %1780 = vst.msk [vmem:[%s2 + $0x60] sm:$0xff] %vm549, %v1690
  %1781 = vst.msk [vmem:[%s2 + $0x68] sm:$0xff] %vm549, %v1694
  %1782 = vst.msk [vmem:[%s2 + $0x70] sm:$0xff] %vm549, %v1698
  %1783 = vst.msk [vmem:[%s2 + $0x78] sm:$0xff] %vm549, %v1702
  %1784 = vst.msk [vmem:[%s2 + $0x80] sm:$0xff] %vm549, %v1706
  %1785 = vst.msk [vmem:[%s2 + $0x88] sm:$0xff] %vm549, %v1710
  %1786 = vst.msk [vmem:[%s2 + $0x90] sm:$0xff] %vm549, %v1714
  %1787 = vst.msk [vmem:[%s2 + $0x98] sm:$0xff] %vm549, %v1718
  %1788 = vst.msk [vmem:[%s2 + $0xa0] sm:$0xff] %vm549, %v1722
  %1789 = vst.msk [vmem:[%s2 + $0xa8] sm:$0xff] %vm549, %v1726
  %1790 = vst.msk [vmem:[%s2 + $0xb0] sm:$0xff] %vm549, %v1730
  %1791 = vst.msk [vmem:[%s2 + $0xb8] sm:$0xff] %vm549, %v1734
  %1792 = vst.msk [vmem:[%s2 + $0xc0] sm:$0xff] %vm549, %v1738
  %1793 = vst.msk [vmem:[%s2 + $0xc8] sm:$0xff] %vm549, %v1742
  %1794 = vst.msk [vmem:[%s2 + $0xd0] sm:$0xff] %vm549, %v1746
  %1795 = vst.msk [vmem:[%s2 + $0xd8] sm:$0xff] %vm549, %v1750
  %1796 = vst.msk [vmem:[%s2 + $0xe0] sm:$0xff] %vm549, %v1754
  %1797 = vst.msk [vmem:[%s2 + $0xe8] sm:$0xff] %vm549, %v1758
  %1798 = vst.msk [vmem:[%s2 + $0xf0] sm:$0xff] %vm549, %v1762
  %1799 = vst.msk [vmem:[%s2 + $0xf8] sm:$0xff] %vm549, %v1766
  // Predicated region
  $region10: #{tpu_custom_call.1} parent=0 // pred_check
    _
  $region11: #{tpu_custom_call.1} parent=0 // pred_check_branch
    %1801 = sbr.rel (0) target = $region13
  $region12: #{tpu_custom_call.1} parent=0 // pred_region
    _
  $region13: #{tpu_custom_call.1} parent=0 // pred_fallthru
    _
  // Predicated region
  $region14: #{tpu_custom_call.1} parent=0 // pred_check
    _
  $region15: #{tpu_custom_call.1} parent=0 // pred_check_branch
    %1803 = sbr.rel (0) target = $region17
  $region16: #{tpu_custom_call.1} parent=0 // pred_region
    _
  $region17: #{tpu_custom_call.1} parent=0 // pred_fallthru
    _

</llo_original>
